<compile_context>
chip_gen: v5e
topology: v5e:2x2
jax: 0.10.0
libtpu: 0.0.40
codegen_flags: <defaults>
</compile_context>

<pallas_src>
import functools
import math

import jax
import jax.numpy as jnp
from jax.experimental import pallas as pl
from jax.experimental.pallas import tpu as pltpu

LN_EPS = 1e-5          # torch.nn.LayerNorm default
NEG_INF = -1e30        # additive causal mask value (underflows to 0 in exp)

# Stacked-per-layer params fed to the kernel (cond_proj wc/bc are hoisted out).
KERNEL_PARAM_ORDER = (
    "ln1_g", "ln1_b", "ln2_g", "ln2_b",
    "wkqv", "bkqv", "w1", "b1", "w2", "b2",
)
BF16_PARAMS = ("wkqv", "w1", "w2")   # weight matrices pre-cast to bf16 for MXU


# ---------------------------------------------------------------------------
# in-kernel math helpers (exp / where / dot / rsqrt / reciprocal only)
# ---------------------------------------------------------------------------
def _erf(x):
    # Abramowitz & Stegun 7.1.26 polynomial erf (max abs err ~1.5e-7);
    # divide routed to the EUP via approx reciprocal (VALU relief).
    a1, a2, a3, a4, a5 = (0.254829592, -0.284496736, 1.421413741,
                          -1.453152027, 1.061405429)
    p = 0.3275911
    sgn = jnp.where(x >= 0.0, 1.0, -1.0)
    ax = jnp.abs(x)
    t = pl.reciprocal(1.0 + p * ax, approx=True)
    poly = ((((a5 * t + a4) * t + a3) * t + a2) * t + a1) * t
    return sgn * (1.0 - poly * jnp.exp(-ax * ax))


def _gelu(x):
    return 0.5 * x * (1.0 + _erf(x * (1.0 / math.sqrt(2.0))))


def _layernorm(x, gamma, beta):
    mu = jnp.mean(x, axis=-1, keepdims=True)
    xc = x - mu
    var = jnp.mean(xc * xc, axis=-1, keepdims=True)
    return xc * jax.lax.rsqrt(var + LN_EPS) * gamma + beta


# ---------------------------------------------------------------------------
# Pallas kernel: depth-fused AdaLnTransformer for one block of Bt batch rows.
# Grid = (B // Bt, L); the residual stream persists in VMEM scratch across L.
# ---------------------------------------------------------------------------
def adaln_fused_kernel(x_ref, cond_ref, mask_ref,
                       ln1_g_ref, ln1_b_ref, ln2_g_ref, ln2_b_ref,
                       wkqv_ref, bkqv_ref, w1_ref, b1_ref, w2_ref, b2_ref,
                       out_ref, x_acc, *, num_heads, ff_chunk):
    layer = pl.program_id(1)
    n_layers = pl.num_programs(1)

    Bt, T, C = x_acc.shape
    H = num_heads
    D = C // H
    scale = D ** -0.5

    # --- load this batch block into the resident residual scratch ------------
    @pl.when(layer == 0)
    def _():
        x_acc[...] = x_ref[...].astype(jnp.float32)

    mask = mask_ref[...]                       # (T, T) additive causal mask
    ln1_g, ln1_b = ln1_g_ref[0], ln1_b_ref[0]  # (1, C)
    ln2_g, ln2_b = ln2_g_ref[0], ln2_b_ref[0]
    wkqv = wkqv_ref[0]                         # (C, 3C) bf16
    bkqv = bkqv_ref[0]                         # (1, 3C) f32
    b2 = b2_ref[0]                             # (1, C)  f32

    n_ff = w1_ref.shape[-1]
    n_chunks = n_ff // ff_chunk

    # Static loop over batch elements of this block: weights stay resident in
    # VMEM across the loop (that is the weight-amortization win).
    for bb in range(Bt):
        x = x_acc[bb]                          # (T, C) f32 residual stream
        cond = cond_ref[0, bb]                 # (1, 4C) f32 (hoisted c @ wc + bc)
        alpha1 = cond[:, 0 * C:1 * C]
        beta1 = cond[:, 1 * C:2 * C]
        alpha2 = cond[:, 2 * C:3 * C]
        beta2 = cond[:, 3 * C:4 * C]

        # --- attention branch -------------------------------------------------
        h = _layernorm(x, ln1_g, ln1_b)
        h = h * (1.0 + beta1) + alpha1         # modulate(ln1(x), a1, b1)

        kqv = jnp.dot(h.astype(jnp.bfloat16), wkqv,
                      preferred_element_type=jnp.float32) + bkqv
        k = kqv[:, 0 * C:1 * C]                # chunk order: k, q, v
        q = kqv[:, 1 * C:2 * C]
        v = kqv[:, 2 * C:3 * C]

        q_b = (q * scale).astype(jnp.bfloat16)   # fold 1/sqrt(D) into q (f32)
        k_b = k.astype(jnp.bfloat16)
        v_b = v.astype(jnp.bfloat16)

        head_out = []
        for hh in range(H):
            qh = q_b[:, hh * D:(hh + 1) * D]     # (T, D)
            kh = k_b[:, hh * D:(hh + 1) * D]
            vh = v_b[:, hh * D:(hh + 1) * D]
            # scores = (q*scale) @ k^T  (contract over head_dim, no transpose)
            s = jax.lax.dot_general(qh, kh, (((1,), (1,)), ((), ())),
                                    preferred_element_type=jnp.float32)
            s = s + mask                         # additive causal mask
            m = jnp.max(s, axis=-1, keepdims=True)
            e = jnp.exp(s - m)
            denom = jnp.sum(e, axis=-1, keepdims=True)
            # deferred softmax normalization: p@v first, then scale by 1/denom
            pv = jnp.dot(e.astype(jnp.bfloat16), vh,
                         preferred_element_type=jnp.float32)   # (T, D)
            head_out.append(pv * pl.reciprocal(denom, approx=True))
        attn_out = jnp.concatenate(head_out, axis=-1)           # (T, C)
        x = x + attn_out                                        # residual add

        # --- feed-forward branch (GELU after BOTH linears, as in the module) --
        h = _layernorm(x, ln2_g, ln2_b)
        h = h * (1.0 + beta2) + alpha2         # modulate(ln2(x), a2, b2)
        h_b = h.astype(jnp.bfloat16)

        acc = jnp.zeros((T, C), jnp.float32)
        for ck in range(n_chunks):             # hidden-dim chunking (VMEM)
            c0 = ck * ff_chunk
            w1c = w1_ref[0, :, c0:c0 + ff_chunk]     # (C, chunk) bf16
            b1c = b1_ref[0, :, c0:c0 + ff_chunk]     # (1, chunk) f32
            w2c = w2_ref[0, c0:c0 + ff_chunk, :]     # (chunk, C) bf16
            hc = _gelu(jnp.dot(h_b, w1c,
                               preferred_element_type=jnp.float32) + b1c)
            acc = acc + jnp.dot(hc.astype(jnp.bfloat16), w2c,
                                preferred_element_type=jnp.float32)
        ff = _gelu(acc + b2)
        x_acc[bb] = x + ff                      # full-width lane-dense store

    # --- write the output only after the last layer ---------------------------
    @pl.when(layer == n_layers - 1)
    def _():
        out_ref[...] = x_acc[...].astype(out_ref.dtype)


# ---------------------------------------------------------------------------
# VMEM budget: size the scoped limit from the blocks, cap below physical.
# ---------------------------------------------------------------------------
def _vmem_limit_bytes(Bt, T, C):
    bf16, f32 = 2, 4
    w_layer = (3 * C * C + 4 * C * C + 4 * C * C) * bf16       # wkqv + w1 + w2
    b_layer = (4 * C + 3 * C + 4 * C + C + 4 * C) * f32        # lns + biases
    act = Bt * T * C * f32
    est = (2 * (w_layer + b_layer)       # double-buffered layer params
           + 4 * act                     # x in, out, residual scratch
           + 2 * Bt * 4 * C * f32        # cond blocks
           + T * T * f32                 # causal mask
           + 8 * T * C * f32)            # in-kernel temporaries headroom
    try:
        cap = int(getattr(pltpu.get_tpu_info(), "vmem_capacity_bytes",
                          64 * 1024 * 1024))
    except Exception:
        cap = 64 * 1024 * 1024
    return int(min(max(2 * est, 32 * 1024 * 1024), int(cap * 0.85)))


# ---------------------------------------------------------------------------
# one-time parameter prep: cast the big weight matrices to bf16 (outside the
# forward, so the f32->bf16 pass is not paid on every call).
# ---------------------------------------------------------------------------
def prepare_params(params):
    prepared = dict(params)
    for name in BF16_PARAMS:
        prepared[name] = params[name].astype(jnp.bfloat16)
    return prepared


# ---------------------------------------------------------------------------
# wrapper: one pallas_call for the whole transformer (all layers fused)
# ---------------------------------------------------------------------------
def adaln_transformer_pallas(x, c, params, num_heads, *, batch_block=None):
    B, T, C = x.shape
    L = params["wkqv"].shape[0]
    Bt = B if batch_block is None else batch_block
    assert B % Bt == 0, "batch_block must divide batch"

    # Hoisted AdaLN conditioning projection (M=1 matmul, once per layer over
    # the whole batch, plain XLA) -> (L, B, 1, 4C). wc/bc never hit kernel VMEM.
    cond = (jnp.einsum("bsc,lcf->lbsf", c.astype(jnp.float32),
                       params["wc"].astype(jnp.float32))
            + params["bc"][:, None]).astype(jnp.float32)

    # Precomputed additive causal mask, DMA'd once (constant index_map).
    row = jnp.arange(T, dtype=jnp.int32)[:, None]
    col = jnp.arange(T, dtype=jnp.int32)[None, :]
    attn_mask = jnp.where(col <= row, 0.0, NEG_INF).astype(jnp.float32)

    layer_inputs = [params[name] for name in KERNEL_PARAM_ORDER]

    # FFN hidden-dim chunk size (lane-aligned); fall back to unchunked.
    n_ff = 4 * C
    if n_ff <= 512:
        ff_chunk = n_ff
    elif n_ff % 512 == 0:
        ff_chunk = 512
    else:
        ff_chunk = n_ff

    def layer_spec(shape):
        nd = len(shape)
        return pl.BlockSpec((1,) + tuple(shape[1:]),
                            lambda b, l, _nd=nd: (l,) + (0,) * (_nd - 1))

    in_specs = [
        pl.BlockSpec((Bt, T, C), lambda b, l: (b, 0, 0)),            # x
        pl.BlockSpec((1, Bt, 1, 4 * C), lambda b, l: (l, b, 0, 0)),  # cond
        pl.BlockSpec((T, T), lambda b, l: (0, 0)),                   # causal mask
    ] + [layer_spec(a.shape) for a in layer_inputs]

    kernel = functools.partial(adaln_fused_kernel, num_heads=num_heads,
                               ff_chunk=ff_chunk)
    return pl.pallas_call(
        kernel,
        out_shape=jax.ShapeDtypeStruct((B, T, C), x.dtype),
        grid_spec=pltpu.PrefetchScalarGridSpec(
            num_scalar_prefetch=0,
            grid=(B // Bt, L),                 # layer axis innermost (arbitrary)
            in_specs=in_specs,
            out_specs=pl.BlockSpec((Bt, T, C), lambda b, l: (b, 0, 0)),
            scratch_shapes=[pltpu.VMEM((Bt, T, C), jnp.float32)],   # residual
        ),
        compiler_params=pltpu.CompilerParams(
            dimension_semantics=("parallel", "arbitrary"),
            vmem_limit_bytes=_vmem_limit_bytes(Bt, T, C)),
    )(x, cond, attn_mask, *layer_inputs)


# ---------------------------------------------------------------------------
# deterministic parameter init (stacked over depth; mirrors module shapes)
# ---------------------------------------------------------------------------
def init_params(key, dim, depth):
    def w(k, shape):
        return jax.random.normal(k, shape, jnp.float32) * 0.02

    k0, k1, k2, k3, k4, k5 = jax.random.split(key, 6)
    return {
        "ln1_g": jnp.ones((depth, 1, dim), jnp.float32),
        "ln1_b": jnp.zeros((depth, 1, dim), jnp.float32),
        "ln2_g": jnp.ones((depth, 1, dim), jnp.float32),
        "ln2_b": jnp.zeros((depth, 1, dim), jnp.float32),
        "wc": w(k0, (depth, dim, 4 * dim)),
        "bc": w(k1, (depth, 1, 4 * dim)),
        "wkqv": w(k2, (depth, dim, 3 * dim)),
        "bkqv": w(k3, (depth, 1, 3 * dim)),
        "w1": w(k4, (depth, dim, 4 * dim)),
        "b1": jnp.zeros((depth, 1, 4 * dim), jnp.float32),
        "w2": w(k5, (depth, 4 * dim, dim)),
        "b2": jnp.zeros((depth, 1, dim), jnp.float32),
    }


# ---------------------------------------------------------------------------
# pure-JAX reference (matches PyTorch semantics, f32) for validation
# ---------------------------------------------------------------------------
def _ref_block(x, c, p, num_heads):
    B, T, C = x.shape
    D = C // num_heads

    def ln(v, g, b):
        mu = v.mean(-1, keepdims=True)
        var = ((v - mu) ** 2).mean(-1, keepdims=True)
        return (v - mu) / jnp.sqrt(var + LN_EPS) * g + b

    cond = c @ p["wc"] + p["bc"]
    a1, b1m, a2, b2m = jnp.split(cond, 4, axis=-1)

    h = ln(x, p["ln1_g"], p["ln1_b"]) * (1.0 + b1m) + a1
    kqv = h @ p["wkqv"] + p["bkqv"]
    k, q, v = jnp.split(kqv, 3, axis=-1)
    to_heads = lambda t: t.reshape(B, T, num_heads, D).transpose(0, 2, 1, 3)
    q, k, v = to_heads(q), to_heads(k), to_heads(v)
    attn = jnp.einsum("bhqd,bhkd->bhqk", q, k) * (D ** -0.5)
    mask = jnp.tril(jnp.ones((T, T), jnp.float32))
    attn = jnp.where(mask == 0, -jnp.inf, attn)
    attn = jax.nn.softmax(attn, axis=-1)
    o = jnp.einsum("bhqk,bhkd->bhqd", attn, v).transpose(0, 2, 1, 3).reshape(B, T, C)
    x = x + o

    h = ln(x, p["ln2_g"], p["ln2_b"]) * (1.0 + b2m) + a2
    h = jax.nn.gelu(h @ p["w1"] + p["b1"], approximate=False)
    h = jax.nn.gelu(h @ p["w2"] + p["b2"], approximate=False)
    return x + h


def reference_forward(x, c, params, num_heads):
    depth = params["wkqv"].shape[0]
    for l in range(depth):
        p = {k: v[l] for k, v in params.items()}
        x = _ref_block(x, c, p, num_heads)
    return x


# ---------------------------------------------------------------------------
if __name__ == "__main__":
    dim, num_heads, depth, seq_len, batch = 32, 4, 2, 8, 2

    key = jax.random.PRNGKey(0)
    kx, kc, kp = jax.random.split(key, 3)
    x = jax.random.normal(kx, (batch, seq_len, dim), jnp.float32)
    c = jax.random.normal(kc, (batch, 1, dim), jnp.float32)
    params = init_params(kp, dim, depth)
    kparams = prepare_params(params)            # one-time bf16 weight cast

    ref = reference_forward(x, c, params, num_heads)

    # Check both the full-batch block (weights streamed once) and the
    # per-element blocking path (>=2 blocks on the parallel axis).
    for bt in (batch, 1):
        out = jax.block_until_ready(
            adaln_transformer_pallas(x, c, kparams, num_heads, batch_block=bt))
        assert out.shape == ref.shape == (batch, seq_len, dim)
        # bf16 MXU inputs (f32 accumulation) + approx reciprocals -> 2e-2 tol.
        assert jnp.allclose(out, ref, rtol=2e-2, atol=2e-2), (
            bt, float(jnp.max(jnp.abs(out - ref))))

    print("KERNEL_OK")
</pallas_src>

<mosaic_0001>
module attributes {stable_mosaic.version = 11 : i64} {
  func.func @adaln_fused_kernel(%arg0: i32, %arg1: i32, %arg2: memref<2x8x32xf32, #tpu.memory_space<vmem>>, %arg3: memref<1x2x1x128xf32, #tpu.memory_space<vmem>>, %arg4: memref<8x8xf32, #tpu.memory_space<vmem>>, %arg5: memref<1x1x32xf32, #tpu.memory_space<vmem>>, %arg6: memref<1x1x32xf32, #tpu.memory_space<vmem>>, %arg7: memref<1x1x32xf32, #tpu.memory_space<vmem>>, %arg8: memref<1x1x32xf32, #tpu.memory_space<vmem>>, %arg9: memref<1x32x96xbf16, #tpu.memory_space<vmem>>, %arg10: memref<1x1x96xf32, #tpu.memory_space<vmem>>, %arg11: memref<1x32x128xbf16, #tpu.memory_space<vmem>>, %arg12: memref<1x1x128xf32, #tpu.memory_space<vmem>>, %arg13: memref<1x128x32xbf16, #tpu.memory_space<vmem>>, %arg14: memref<1x1x32xf32, #tpu.memory_space<vmem>>, %arg15: memref<2x8x32xf32, #tpu.memory_space<vmem>>, %arg16: memref<2x8x32xf32, #tpu.memory_space<vmem>>) attributes {dimension_semantics = [#tpu.dimension_semantics<parallel>, #tpu.dimension_semantics<arbitrary>], iteration_bounds = array<i64: 1, 2>, scalar_prefetch = 0 : i64, scratch_operands = 1 : i64, tpu.core_type = #tpu.core_type<tc>, window_params = [{transform_indices = @transform_0, window_bounds = array<i64: 2, 8, 32>}, {transform_indices = @transform_1, window_bounds = array<i64: 1, 2, 1, 128>}, {pipeline_mode = #tpu.pipeline_mode<synchronous>, transform_indices = @transform_2, window_bounds = array<i64: 8, 8>}, {transform_indices = @transform_3, window_bounds = array<i64: 1, 1, 32>}, {transform_indices = @transform_4, window_bounds = array<i64: 1, 1, 32>}, {transform_indices = @transform_5, window_bounds = array<i64: 1, 1, 32>}, {transform_indices = @transform_6, window_bounds = array<i64: 1, 1, 32>}, {transform_indices = @transform_7, window_bounds = array<i64: 1, 32, 96>}, {transform_indices = @transform_8, window_bounds = array<i64: 1, 1, 96>}, {transform_indices = @transform_9, window_bounds = array<i64: 1, 32, 128>}, {transform_indices = @transform_10, window_bounds = array<i64: 1, 1, 128>}, {transform_indices = @transform_11, window_bounds = array<i64: 1, 128, 32>}, {transform_indices = @transform_12, window_bounds = array<i64: 1, 1, 32>}, {transform_indices = @transform_13, window_bounds = array<i64: 2, 8, 32>}]} {
    %c0_i32 = arith.constant 0 : i32
    %0 = arith.cmpi eq, %arg1, %c0_i32 : i32
    %1 = arith.extui %0 : i1 to i32
    %c0_i32_0 = arith.constant 0 : i32
    %2 = arith.cmpi ne, %1, %c0_i32_0 : i32
    scf.if %2 {
      %c0_186 = arith.constant 0 : index
      %c0_187 = arith.constant 0 : index
      %c0_188 = arith.constant 0 : index
      %505 = vector.load %arg2[%c0_186, %c0_187, %c0_188] : memref<2x8x32xf32, #tpu.memory_space<vmem>>, vector<2x8x32xf32>
      %c0_189 = arith.constant 0 : index
      %c0_190 = arith.constant 0 : index
      %c0_191 = arith.constant 0 : index
      %506 = vector.load %arg16[%c0_189, %c0_190, %c0_191] : memref<2x8x32xf32, #tpu.memory_space<vmem>>, vector<2x8x32xf32>
      tpu.vector_store %arg16[%c0_189, %c0_190, %c0_191], %505 {strides = array<i32>} : memref<2x8x32xf32, #tpu.memory_space<vmem>>, vector<2x8x32xf32>,
    } else {
    }
    %c0 = arith.constant 0 : index
    %c0_1 = arith.constant 0 : index
    %3 = vector.load %arg4[%c0, %c0_1] : memref<8x8xf32, #tpu.memory_space<vmem>>, vector<8x8xf32>
    %c0_2 = arith.constant 0 : index
    %c0_3 = arith.constant 0 : index
    %c0_4 = arith.constant 0 : index
    %4 = vector.load %arg5[%c0_2, %c0_3, %c0_4] : memref<1x1x32xf32, #tpu.memory_space<vmem>>, vector<1x1x32xf32>
    %5 = vector.shape_cast %4 : vector<1x1x32xf32> to vector<1x32xf32>
    %c0_5 = arith.constant 0 : index
    %c0_6 = arith.constant 0 : index
    %c0_7 = arith.constant 0 : index
    %6 = vector.load %arg6[%c0_5, %c0_6, %c0_7] : memref<1x1x32xf32, #tpu.memory_space<vmem>>, vector<1x1x32xf32>
    %7 = vector.shape_cast %6 : vector<1x1x32xf32> to vector<1x32xf32>
    %c0_8 = arith.constant 0 : index
    %c0_9 = arith.constant 0 : index
    %c0_10 = arith.constant 0 : index
    %8 = vector.load %arg7[%c0_8, %c0_9, %c0_10] : memref<1x1x32xf32, #tpu.memory_space<vmem>>, vector<1x1x32xf32>
    %9 = vector.shape_cast %8 : vector<1x1x32xf32> to vector<1x32xf32>
    %c0_11 = arith.constant 0 : index
    %c0_12 = arith.constant 0 : index
    %c0_13 = arith.constant 0 : index
    %10 = vector.load %arg8[%c0_11, %c0_12, %c0_13] : memref<1x1x32xf32, #tpu.memory_space<vmem>>, vector<1x1x32xf32>
    %11 = vector.shape_cast %10 : vector<1x1x32xf32> to vector<1x32xf32>
    %c0_14 = arith.constant 0 : index
    %c0_15 = arith.constant 0 : index
    %c0_16 = arith.constant 0 : index
    %12 = vector.load %arg9[%c0_14, %c0_15, %c0_16] : memref<1x32x96xbf16, #tpu.memory_space<vmem>>, vector<1x32x96xbf16>
    %13 = vector.shape_cast %12 : vector<1x32x96xbf16> to vector<32x96xbf16>
    %c0_17 = arith.constant 0 : index
    %c0_18 = arith.constant 0 : index
    %c0_19 = arith.constant 0 : index
    %14 = vector.load %arg10[%c0_17, %c0_18, %c0_19] : memref<1x1x96xf32, #tpu.memory_space<vmem>>, vector<1x1x96xf32>
    %15 = vector.shape_cast %14 : vector<1x1x96xf32> to vector<1x96xf32>
    %c0_20 = arith.constant 0 : index
    %c0_21 = arith.constant 0 : index
    %c0_22 = arith.constant 0 : index
    %16 = vector.load %arg14[%c0_20, %c0_21, %c0_22] : memref<1x1x32xf32, #tpu.memory_space<vmem>>, vector<1x1x32xf32>
    %17 = vector.shape_cast %16 : vector<1x1x32xf32> to vector<1x32xf32>
    %c0_23 = arith.constant 0 : index
    %c0_24 = arith.constant 0 : index
    %c0_25 = arith.constant 0 : index
    %18 = vector.load %arg16[%c0_23, %c0_24, %c0_25] : memref<2x8x32xf32, #tpu.memory_space<vmem>>, vector<1x8x32xf32>
    %19 = vector.shape_cast %18 : vector<1x8x32xf32> to vector<8x32xf32>
    %c0_26 = arith.constant 0 : index
    %c0_27 = arith.constant 0 : index
    %c0_28 = arith.constant 0 : index
    %c0_29 = arith.constant 0 : index
    %20 = vector.load %arg3[%c0_26, %c0_27, %c0_28, %c0_29] : memref<1x2x1x128xf32, #tpu.memory_space<vmem>>, vector<1x1x1x128xf32>
    %21 = vector.shape_cast %20 : vector<1x1x1x128xf32> to vector<1x128xf32>
    %22 = vector.extract_strided_slice %21 {offsets = [0, 0], sizes = [1, 32], strides = [1, 1]} : vector<1x128xf32> to vector<1x32xf32>
    %23 = vector.extract_strided_slice %21 {offsets = [0, 32], sizes = [1, 32], strides = [1, 1]} : vector<1x128xf32> to vector<1x32xf32>
    %24 = vector.extract_strided_slice %21 {offsets = [0, 64], sizes = [1, 32], strides = [1, 1]} : vector<1x128xf32> to vector<1x32xf32>
    %25 = vector.extract_strided_slice %21 {offsets = [0, 96], sizes = [1, 32], strides = [1, 1]} : vector<1x128xf32> to vector<1x32xf32>
    %cst = arith.constant dense<0.000000e+00> : vector<8xf32>
    %26 = vector.multi_reduction <add>, %19, %cst [1] : vector<8x32xf32> to vector<8xf32>
    %27 = vector.shape_cast %26 : vector<8xf32> to vector<8x1xf32>
    %cst_30 = arith.constant 3.200000e+01 : f32
    %28 = vector.broadcast %cst_30 : f32 to vector<8x1xf32>
    %29 = arith.divf %27, %28 : vector<8x1xf32>
    %30 = vector.broadcast %29 : vector<8x1xf32> to vector<8x32xf32>
    %31 = arith.subf %19, %30 : vector<8x32xf32>
    %32 = arith.mulf %31, %31 : vector<8x32xf32>
    %cst_31 = arith.constant dense<0.000000e+00> : vector<8xf32>
    %33 = vector.multi_reduction <add>, %32, %cst_31 [1] : vector<8x32xf32> to vector<8xf32>
    %34 = vector.shape_cast %33 : vector<8xf32> to vector<8x1xf32>
    %cst_32 = arith.constant 3.200000e+01 : f32
    %35 = vector.broadcast %cst_32 : f32 to vector<8x1xf32>
    %36 = arith.divf %34, %35 : vector<8x1xf32>
    %cst_33 = arith.constant 9.99999974E-6 : f32
    %37 = vector.broadcast %cst_33 : f32 to vector<8x1xf32>
    %38 = arith.addf %36, %37 : vector<8x1xf32>
    %39 = math.rsqrt %38 : vector<8x1xf32>
    %40 = vector.broadcast %39 : vector<8x1xf32> to vector<8x32xf32>
    %41 = arith.mulf %31, %40 : vector<8x32xf32>
    %42 = vector.broadcast %5 : vector<1x32xf32> to vector<8x32xf32>
    %43 = arith.mulf %41, %42 : vector<8x32xf32>
    %44 = vector.broadcast %7 : vector<1x32xf32> to vector<8x32xf32>
    %45 = arith.addf %43, %44 : vector<8x32xf32>
    %cst_34 = arith.constant 1.000000e+00 : f32
    %46 = vector.broadcast %cst_34 : f32 to vector<1x32xf32>
    %47 = arith.addf %46, %23 : vector<1x32xf32>
    %48 = vector.broadcast %47 : vector<1x32xf32> to vector<8x32xf32>
    %49 = arith.mulf %45, %48 : vector<8x32xf32>
    %50 = vector.broadcast %22 : vector<1x32xf32> to vector<8x32xf32>
    %51 = arith.addf %49, %50 : vector<8x32xf32>
    %52 = arith.truncf %51 : vector<8x32xf32> to vector<8x32xbf16>
    %cst_35 = arith.constant dense<0.000000e+00> : vector<8x96xf32>
    %53 = tpu.matmul %52, %13, %cst_35 {dimension_numbers = #tpu.dot_dimension_numbers<[1], [0], [0], [1], [0, 0, 1, 1], [], []>} : vector<8x32xbf16>, vector<32x96xbf16>, vector<8x96xf32> -> vector<8x96xf32>
    %54 = vector.broadcast %15 : vector<1x96xf32> to vector<8x96xf32>
    %55 = arith.addf %53, %54 : vector<8x96xf32>
    %56 = vector.extract_strided_slice %55 {offsets = [0, 0], sizes = [8, 32], strides = [1, 1]} : vector<8x96xf32> to vector<8x32xf32>
    %57 = vector.extract_strided_slice %55 {offsets = [0, 32], sizes = [8, 32], strides = [1, 1]} : vector<8x96xf32> to vector<8x32xf32>
    %58 = vector.extract_strided_slice %55 {offsets = [0, 64], sizes = [8, 32], strides = [1, 1]} : vector<8x96xf32> to vector<8x32xf32>
    %cst_36 = arith.constant 0.353553385 : f32
    %59 = vector.broadcast %cst_36 : f32 to vector<8x32xf32>
    %60 = arith.mulf %57, %59 : vector<8x32xf32>
    %61 = arith.truncf %60 : vector<8x32xf32> to vector<8x32xbf16>
    %62 = arith.truncf %56 : vector<8x32xf32> to vector<8x32xbf16>
    %63 = arith.truncf %58 : vector<8x32xf32> to vector<8x32xbf16>
    %64 = vector.extract_strided_slice %61 {offsets = [0, 0], sizes = [8, 8], strides = [1, 1]} : vector<8x32xbf16> to vector<8x8xbf16>
    %65 = vector.extract_strided_slice %62 {offsets = [0, 0], sizes = [8, 8], strides = [1, 1]} : vector<8x32xbf16> to vector<8x8xbf16>
    %66 = vector.extract_strided_slice %63 {offsets = [0, 0], sizes = [8, 8], strides = [1, 1]} : vector<8x32xbf16> to vector<8x8xbf16>
    %cst_37 = arith.constant dense<0.000000e+00> : vector<8x8xf32>
    %67 = tpu.matmul %64, %65, %cst_37 {dimension_numbers = #tpu.dot_dimension_numbers<[1], [1], [0], [0], [0, 0, 1, 0], [], []>} : vector<8x8xbf16>, vector<8x8xbf16>, vector<8x8xf32> -> vector<8x8xf32>
    %68 = arith.addf %67, %3 : vector<8x8xf32>
    %cst_38 = arith.constant dense<0xFF800000> : vector<8xf32>
    %69 = vector.multi_reduction <maximumf>, %68, %cst_38 [1] : vector<8x8xf32> to vector<8xf32>
    %70 = vector.shape_cast %69 : vector<8xf32> to vector<8x1xf32>
    %71 = vector.broadcast %70 : vector<8x1xf32> to vector<8x8xf32>
    %72 = arith.subf %68, %71 : vector<8x8xf32>
    %73 = math.exp %72 : vector<8x8xf32>
    %cst_39 = arith.constant dense<0.000000e+00> : vector<8xf32>
    %74 = vector.multi_reduction <add>, %73, %cst_39 [1] : vector<8x8xf32> to vector<8xf32>
    %75 = vector.shape_cast %74 : vector<8xf32> to vector<8x1xf32>
    %76 = arith.truncf %73 : vector<8x8xf32> to vector<8x8xbf16>
    %cst_40 = arith.constant dense<0.000000e+00> : vector<8x8xf32>
    %77 = tpu.matmul %76, %66, %cst_40 {dimension_numbers = #tpu.dot_dimension_numbers<[1], [0], [0], [1], [0, 0, 1, 1], [], []>} : vector<8x8xbf16>, vector<8x8xbf16>, vector<8x8xf32> -> vector<8x8xf32>
    %78 = tpu.reciprocal %75 {approx = true} : vector<8x1xf32> -> vector<8x1xf32>
    %79 = vector.broadcast %78 : vector<8x1xf32> to vector<8x8xf32>
    %80 = arith.mulf %77, %79 : vector<8x8xf32>
    %81 = vector.extract_strided_slice %61 {offsets = [0, 8], sizes = [8, 8], strides = [1, 1]} : vector<8x32xbf16> to vector<8x8xbf16>
    %82 = vector.extract_strided_slice %62 {offsets = [0, 8], sizes = [8, 8], strides = [1, 1]} : vector<8x32xbf16> to vector<8x8xbf16>
    %83 = vector.extract_strided_slice %63 {offsets = [0, 8], sizes = [8, 8], strides = [1, 1]} : vector<8x32xbf16> to vector<8x8xbf16>
    %cst_41 = arith.constant dense<0.000000e+00> : vector<8x8xf32>
    %84 = tpu.matmul %81, %82, %cst_41 {dimension_numbers = #tpu.dot_dimension_numbers<[1], [1], [0], [0], [0, 0, 1, 0], [], []>} : vector<8x8xbf16>, vector<8x8xbf16>, vector<8x8xf32> -> vector<8x8xf32>
    %85 = arith.addf %84, %3 : vector<8x8xf32>
    %cst_42 = arith.constant dense<0xFF800000> : vector<8xf32>
    %86 = vector.multi_reduction <maximumf>, %85, %cst_42 [1] : vector<8x8xf32> to vector<8xf32>
    %87 = vector.shape_cast %86 : vector<8xf32> to vector<8x1xf32>
    %88 = vector.broadcast %87 : vector<8x1xf32> to vector<8x8xf32>
    %89 = arith.subf %85, %88 : vector<8x8xf32>
    %90 = math.exp %89 : vector<8x8xf32>
    %cst_43 = arith.constant dense<0.000000e+00> : vector<8xf32>
    %91 = vector.multi_reduction <add>, %90, %cst_43 [1] : vector<8x8xf32> to vector<8xf32>
    %92 = vector.shape_cast %91 : vector<8xf32> to vector<8x1xf32>
    %93 = arith.truncf %90 : vector<8x8xf32> to vector<8x8xbf16>
    %cst_44 = arith.constant dense<0.000000e+00> : vector<8x8xf32>
    %94 = tpu.matmul %93, %83, %cst_44 {dimension_numbers = #tpu.dot_dimension_numbers<[1], [0], [0], [1], [0, 0, 1, 1], [], []>} : vector<8x8xbf16>, vector<8x8xbf16>, vector<8x8xf32> -> vector<8x8xf32>
    %95 = tpu.reciprocal %92 {approx = true} : vector<8x1xf32> -> vector<8x1xf32>
    %96 = vector.broadcast %95 : vector<8x1xf32> to vector<8x8xf32>
    %97 = arith.mulf %94, %96 : vector<8x8xf32>
    %98 = vector.extract_strided_slice %61 {offsets = [0, 16], sizes = [8, 8], strides = [1, 1]} : vector<8x32xbf16> to vector<8x8xbf16>
    %99 = vector.extract_strided_slice %62 {offsets = [0, 16], sizes = [8, 8], strides = [1, 1]} : vector<8x32xbf16> to vector<8x8xbf16>
    %100 = vector.extract_strided_slice %63 {offsets = [0, 16], sizes = [8, 8], strides = [1, 1]} : vector<8x32xbf16> to vector<8x8xbf16>
    %cst_45 = arith.constant dense<0.000000e+00> : vector<8x8xf32>
    %101 = tpu.matmul %98, %99, %cst_45 {dimension_numbers = #tpu.dot_dimension_numbers<[1], [1], [0], [0], [0, 0, 1, 0], [], []>} : vector<8x8xbf16>, vector<8x8xbf16>, vector<8x8xf32> -> vector<8x8xf32>
    %102 = arith.addf %101, %3 : vector<8x8xf32>
    %cst_46 = arith.constant dense<0xFF800000> : vector<8xf32>
    %103 = vector.multi_reduction <maximumf>, %102, %cst_46 [1] : vector<8x8xf32> to vector<8xf32>
    %104 = vector.shape_cast %103 : vector<8xf32> to vector<8x1xf32>
    %105 = vector.broadcast %104 : vector<8x1xf32> to vector<8x8xf32>
    %106 = arith.subf %102, %105 : vector<8x8xf32>
    %107 = math.exp %106 : vector<8x8xf32>
    %cst_47 = arith.constant dense<0.000000e+00> : vector<8xf32>
    %108 = vector.multi_reduction <add>, %107, %cst_47 [1] : vector<8x8xf32> to vector<8xf32>
    %109 = vector.shape_cast %108 : vector<8xf32> to vector<8x1xf32>
    %110 = arith.truncf %107 : vector<8x8xf32> to vector<8x8xbf16>
    %cst_48 = arith.constant dense<0.000000e+00> : vector<8x8xf32>
    %111 = tpu.matmul %110, %100, %cst_48 {dimension_numbers = #tpu.dot_dimension_numbers<[1], [0], [0], [1], [0, 0, 1, 1], [], []>} : vector<8x8xbf16>, vector<8x8xbf16>, vector<8x8xf32> -> vector<8x8xf32>
    %112 = tpu.reciprocal %109 {approx = true} : vector<8x1xf32> -> vector<8x1xf32>
    %113 = vector.broadcast %112 : vector<8x1xf32> to vector<8x8xf32>
    %114 = arith.mulf %111, %113 : vector<8x8xf32>
    %115 = vector.extract_strided_slice %61 {offsets = [0, 24], sizes = [8, 8], strides = [1, 1]} : vector<8x32xbf16> to vector<8x8xbf16>
    %116 = vector.extract_strided_slice %62 {offsets = [0, 24], sizes = [8, 8], strides = [1, 1]} : vector<8x32xbf16> to vector<8x8xbf16>
    %117 = vector.extract_strided_slice %63 {offsets = [0, 24], sizes = [8, 8], strides = [1, 1]} : vector<8x32xbf16> to vector<8x8xbf16>
    %cst_49 = arith.constant dense<0.000000e+00> : vector<8x8xf32>
    %118 = tpu.matmul %115, %116, %cst_49 {dimension_numbers = #tpu.dot_dimension_numbers<[1], [1], [0], [0], [0, 0, 1, 0], [], []>} : vector<8x8xbf16>, vector<8x8xbf16>, vector<8x8xf32> -> vector<8x8xf32>
    %119 = arith.addf %118, %3 : vector<8x8xf32>
    %cst_50 = arith.constant dense<0xFF800000> : vector<8xf32>
    %120 = vector.multi_reduction <maximumf>, %119, %cst_50 [1] : vector<8x8xf32> to vector<8xf32>
    %121 = vector.shape_cast %120 : vector<8xf32> to vector<8x1xf32>
    %122 = vector.broadcast %121 : vector<8x1xf32> to vector<8x8xf32>
    %123 = arith.subf %119, %122 : vector<8x8xf32>
    %124 = math.exp %123 : vector<8x8xf32>
    %cst_51 = arith.constant dense<0.000000e+00> : vector<8xf32>
    %125 = vector.multi_reduction <add>, %124, %cst_51 [1] : vector<8x8xf32> to vector<8xf32>
    %126 = vector.shape_cast %125 : vector<8xf32> to vector<8x1xf32>
    %127 = arith.truncf %124 : vector<8x8xf32> to vector<8x8xbf16>
    %cst_52 = arith.constant dense<0.000000e+00> : vector<8x8xf32>
    %128 = tpu.matmul %127, %117, %cst_52 {dimension_numbers = #tpu.dot_dimension_numbers<[1], [0], [0], [1], [0, 0, 1, 1], [], []>} : vector<8x8xbf16>, vector<8x8xbf16>, vector<8x8xf32> -> vector<8x8xf32>
    %129 = tpu.reciprocal %126 {approx = true} : vector<8x1xf32> -> vector<8x1xf32>
    %130 = vector.broadcast %129 : vector<8x1xf32> to vector<8x8xf32>
    %131 = arith.mulf %128, %130 : vector<8x8xf32>
    %132 = tpu.concatenate %80, %97, %114, %131 in 1 : vector<8x8xf32>, vector<8x8xf32>, vector<8x8xf32>, vector<8x8xf32> -> vector<8x32xf32>
    %133 = arith.addf %19, %132 : vector<8x32xf32>
    %cst_53 = arith.constant dense<0.000000e+00> : vector<8xf32>
    %134 = vector.multi_reduction <add>, %133, %cst_53 [1] : vector<8x32xf32> to vector<8xf32>
    %135 = vector.shape_cast %134 : vector<8xf32> to vector<8x1xf32>
    %cst_54 = arith.constant 3.200000e+01 : f32
    %136 = vector.broadcast %cst_54 : f32 to vector<8x1xf32>
    %137 = arith.divf %135, %136 : vector<8x1xf32>
    %138 = vector.broadcast %137 : vector<8x1xf32> to vector<8x32xf32>
    %139 = arith.subf %133, %138 : vector<8x32xf32>
    %140 = arith.mulf %139, %139 : vector<8x32xf32>
    %cst_55 = arith.constant dense<0.000000e+00> : vector<8xf32>
    %141 = vector.multi_reduction <add>, %140, %cst_55 [1] : vector<8x32xf32> to vector<8xf32>
    %142 = vector.shape_cast %141 : vector<8xf32> to vector<8x1xf32>
    %cst_56 = arith.constant 3.200000e+01 : f32
    %143 = vector.broadcast %cst_56 : f32 to vector<8x1xf32>
    %144 = arith.divf %142, %143 : vector<8x1xf32>
    %cst_57 = arith.constant 9.99999974E-6 : f32
    %145 = vector.broadcast %cst_57 : f32 to vector<8x1xf32>
    %146 = arith.addf %144, %145 : vector<8x1xf32>
    %147 = math.rsqrt %146 : vector<8x1xf32>
    %148 = vector.broadcast %147 : vector<8x1xf32> to vector<8x32xf32>
    %149 = arith.mulf %139, %148 : vector<8x32xf32>
    %150 = vector.broadcast %9 : vector<1x32xf32> to vector<8x32xf32>
    %151 = arith.mulf %149, %150 : vector<8x32xf32>
    %152 = vector.broadcast %11 : vector<1x32xf32> to vector<8x32xf32>
    %153 = arith.addf %151, %152 : vector<8x32xf32>
    %cst_58 = arith.constant 1.000000e+00 : f32
    %154 = vector.broadcast %cst_58 : f32 to vector<1x32xf32>
    %155 = arith.addf %154, %25 : vector<1x32xf32>
    %156 = vector.broadcast %155 : vector<1x32xf32> to vector<8x32xf32>
    %157 = arith.mulf %153, %156 : vector<8x32xf32>
    %158 = vector.broadcast %24 : vector<1x32xf32> to vector<8x32xf32>
    %159 = arith.addf %157, %158 : vector<8x32xf32>
    %160 = arith.truncf %159 : vector<8x32xf32> to vector<8x32xbf16>
    %cst_59 = arith.constant 0.000000e+00 : f32
    %161 = vector.broadcast %cst_59 : f32 to vector<8x32xf32>
    %c0_60 = arith.constant 0 : index
    %c0_61 = arith.constant 0 : index
    %c0_62 = arith.constant 0 : index
    %162 = vector.load %arg11[%c0_60, %c0_61, %c0_62] : memref<1x32x128xbf16, #tpu.memory_space<vmem>>, vector<1x32x128xbf16>
    %163 = vector.shape_cast %162 : vector<1x32x128xbf16> to vector<32x128xbf16>
    %c0_63 = arith.constant 0 : index
    %c0_64 = arith.constant 0 : index
    %c0_65 = arith.constant 0 : index
    %164 = vector.load %arg12[%c0_63, %c0_64, %c0_65] : memref<1x1x128xf32, #tpu.memory_space<vmem>>, vector<1x1x128xf32>
    %165 = vector.shape_cast %164 : vector<1x1x128xf32> to vector<1x128xf32>
    %c0_66 = arith.constant 0 : index
    %c0_67 = arith.constant 0 : index
    %c0_68 = arith.constant 0 : index
    %166 = vector.load %arg13[%c0_66, %c0_67, %c0_68] : memref<1x128x32xbf16, #tpu.memory_space<vmem>>, vector<1x128x32xbf16>
    %167 = vector.shape_cast %166 : vector<1x128x32xbf16> to vector<128x32xbf16>
    %cst_69 = arith.constant dense<0.000000e+00> : vector<8x128xf32>
    %168 = tpu.matmul %160, %163, %cst_69 {dimension_numbers = #tpu.dot_dimension_numbers<[1], [0], [0], [1], [0, 0, 1, 1], [], []>} : vector<8x32xbf16>, vector<32x128xbf16>, vector<8x128xf32> -> vector<8x128xf32>
    %169 = vector.broadcast %165 : vector<1x128xf32> to vector<8x128xf32>
    %170 = arith.addf %168, %169 : vector<8x128xf32>
    %cst_70 = arith.constant 5.000000e-01 : f32
    %171 = vector.broadcast %cst_70 : f32 to vector<8x128xf32>
    %172 = arith.mulf %171, %170 : vector<8x128xf32>
    %cst_71 = arith.constant 0.707106769 : f32
    %173 = vector.broadcast %cst_71 : f32 to vector<8x128xf32>
    %174 = arith.mulf %170, %173 : vector<8x128xf32>
    %cst_72 = arith.constant 0.000000e+00 : f32
    %175 = vector.broadcast %cst_72 : f32 to vector<8x128xf32>
    %176 = arith.cmpf oge, %174, %175 : vector<8x128xf32>
    %cst_73 = arith.constant 1.000000e+00 : f32
    %cst_74 = arith.constant -1.000000e+00 : f32
    %177 = vector.broadcast %cst_73 : f32 to vector<8x128xf32>
    %178 = vector.broadcast %cst_74 : f32 to vector<8x128xf32>
    %179 = arith.select %176, %177, %178 : vector<8x128xi1>, vector<8x128xf32>
    %180 = math.absf %174 : vector<8x128xf32>
    %cst_75 = arith.constant 0.327591091 : f32
    %181 = vector.broadcast %cst_75 : f32 to vector<8x128xf32>
    %182 = arith.mulf %181, %180 : vector<8x128xf32>
    %cst_76 = arith.constant 1.000000e+00 : f32
    %183 = vector.broadcast %cst_76 : f32 to vector<8x128xf32>
    %184 = arith.addf %183, %182 : vector<8x128xf32>
    %185 = tpu.reciprocal %184 {approx = true} : vector<8x128xf32> -> vector<8x128xf32>
    %cst_77 = arith.constant 1.06140542 : f32
    %186 = vector.broadcast %cst_77 : f32 to vector<8x128xf32>
    %187 = arith.mulf %186, %185 : vector<8x128xf32>
    %cst_78 = arith.constant -1.45315206 : f32
    %188 = vector.broadcast %cst_78 : f32 to vector<8x128xf32>
    %189 = arith.addf %187, %188 : vector<8x128xf32>
    %190 = arith.mulf %189, %185 : vector<8x128xf32>
    %cst_79 = arith.constant 1.42141378 : f32
    %191 = vector.broadcast %cst_79 : f32 to vector<8x128xf32>
    %192 = arith.addf %190, %191 : vector<8x128xf32>
    %193 = arith.mulf %192, %185 : vector<8x128xf32>
    %cst_80 = arith.constant -0.284496725 : f32
    %194 = vector.broadcast %cst_80 : f32 to vector<8x128xf32>
    %195 = arith.addf %193, %194 : vector<8x128xf32>
    %196 = arith.mulf %195, %185 : vector<8x128xf32>
    %cst_81 = arith.constant 0.254829586 : f32
    %197 = vector.broadcast %cst_81 : f32 to vector<8x128xf32>
    %198 = arith.addf %196, %197 : vector<8x128xf32>
    %199 = arith.mulf %198, %185 : vector<8x128xf32>
    %cst_82 = arith.constant 0.000000e+00 : f32
    %200 = vector.broadcast %cst_82 : f32 to vector<8x128xf32>
    %201 = arith.subf %200, %180 : vector<8x128xf32>
    %202 = arith.mulf %201, %180 : vector<8x128xf32>
    %203 = math.exp %202 : vector<8x128xf32>
    %204 = arith.mulf %199, %203 : vector<8x128xf32>
    %cst_83 = arith.constant 1.000000e+00 : f32
    %205 = vector.broadcast %cst_83 : f32 to vector<8x128xf32>
    %206 = arith.subf %205, %204 : vector<8x128xf32>
    %207 = arith.mulf %179, %206 : vector<8x128xf32>
    %cst_84 = arith.constant 1.000000e+00 : f32
    %208 = vector.broadcast %cst_84 : f32 to vector<8x128xf32>
    %209 = arith.addf %208, %207 : vector<8x128xf32>
    %210 = arith.mulf %172, %209 : vector<8x128xf32>
    %211 = arith.truncf %210 : vector<8x128xf32> to vector<8x128xbf16>
    %cst_85 = arith.constant dense<0.000000e+00> : vector<8x32xf32>
    %212 = tpu.matmul %211, %167, %cst_85 {dimension_numbers = #tpu.dot_dimension_numbers<[1], [0], [0], [1], [0, 0, 1, 1], [], []>} : vector<8x128xbf16>, vector<128x32xbf16>, vector<8x32xf32> -> vector<8x32xf32>
    %213 = arith.addf %161, %212 : vector<8x32xf32>
    %214 = vector.broadcast %17 : vector<1x32xf32> to vector<8x32xf32>
    %215 = arith.addf %213, %214 : vector<8x32xf32>
    %cst_86 = arith.constant 5.000000e-01 : f32
    %216 = vector.broadcast %cst_86 : f32 to vector<8x32xf32>
    %217 = arith.mulf %216, %215 : vector<8x32xf32>
    %cst_87 = arith.constant 0.707106769 : f32
    %218 = vector.broadcast %cst_87 : f32 to vector<8x32xf32>
    %219 = arith.mulf %215, %218 : vector<8x32xf32>
    %cst_88 = arith.constant 0.000000e+00 : f32
    %220 = vector.broadcast %cst_88 : f32 to vector<8x32xf32>
    %221 = arith.cmpf oge, %219, %220 : vector<8x32xf32>
    %cst_89 = arith.constant 1.000000e+00 : f32
    %cst_90 = arith.constant -1.000000e+00 : f32
    %222 = vector.broadcast %cst_89 : f32 to vector<8x32xf32>
    %223 = vector.broadcast %cst_90 : f32 to vector<8x32xf32>
    %224 = arith.select %221, %222, %223 : vector<8x32xi1>, vector<8x32xf32>
    %225 = math.absf %219 : vector<8x32xf32>
    %cst_91 = arith.constant 0.327591091 : f32
    %226 = vector.broadcast %cst_91 : f32 to vector<8x32xf32>
    %227 = arith.mulf %226, %225 : vector<8x32xf32>
    %cst_92 = arith.constant 1.000000e+00 : f32
    %228 = vector.broadcast %cst_92 : f32 to vector<8x32xf32>
    %229 = arith.addf %228, %227 : vector<8x32xf32>
    %230 = tpu.reciprocal %229 {approx = true} : vector<8x32xf32> -> vector<8x32xf32>
    %cst_93 = arith.constant 1.06140542 : f32
    %231 = vector.broadcast %cst_93 : f32 to vector<8x32xf32>
    %232 = arith.mulf %231, %230 : vector<8x32xf32>
    %cst_94 = arith.constant -1.45315206 : f32
    %233 = vector.broadcast %cst_94 : f32 to vector<8x32xf32>
    %234 = arith.addf %232, %233 : vector<8x32xf32>
    %235 = arith.mulf %234, %230 : vector<8x32xf32>
    %cst_95 = arith.constant 1.42141378 : f32
    %236 = vector.broadcast %cst_95 : f32 to vector<8x32xf32>
    %237 = arith.addf %235, %236 : vector<8x32xf32>
    %238 = arith.mulf %237, %230 : vector<8x32xf32>
    %cst_96 = arith.constant -0.284496725 : f32
    %239 = vector.broadcast %cst_96 : f32 to vector<8x32xf32>
    %240 = arith.addf %238, %239 : vector<8x32xf32>
    %241 = arith.mulf %240, %230 : vector<8x32xf32>
    %cst_97 = arith.constant 0.254829586 : f32
    %242 = vector.broadcast %cst_97 : f32 to vector<8x32xf32>
    %243 = arith.addf %241, %242 : vector<8x32xf32>
    %244 = arith.mulf %243, %230 : vector<8x32xf32>
    %cst_98 = arith.constant 0.000000e+00 : f32
    %245 = vector.broadcast %cst_98 : f32 to vector<8x32xf32>
    %246 = arith.subf %245, %225 : vector<8x32xf32>
    %247 = arith.mulf %246, %225 : vector<8x32xf32>
    %248 = math.exp %247 : vector<8x32xf32>
    %249 = arith.mulf %244, %248 : vector<8x32xf32>
    %cst_99 = arith.constant 1.000000e+00 : f32
    %250 = vector.broadcast %cst_99 : f32 to vector<8x32xf32>
    %251 = arith.subf %250, %249 : vector<8x32xf32>
    %252 = arith.mulf %224, %251 : vector<8x32xf32>
    %cst_100 = arith.constant 1.000000e+00 : f32
    %253 = vector.broadcast %cst_100 : f32 to vector<8x32xf32>
    %254 = arith.addf %253, %252 : vector<8x32xf32>
    %255 = arith.mulf %217, %254 : vector<8x32xf32>
    %256 = arith.addf %133, %255 : vector<8x32xf32>
    %c0_101 = arith.constant 0 : index
    %c0_102 = arith.constant 0 : index
    %c0_103 = arith.constant 0 : index
    %257 = vector.load %arg16[%c0_101, %c0_102, %c0_103] : memref<2x8x32xf32, #tpu.memory_space<vmem>>, vector<1x8x32xf32>
    %258 = vector.shape_cast %257 : vector<1x8x32xf32> to vector<8x32xf32>
    %259 = vector.shape_cast %256 : vector<8x32xf32> to vector<1x8x32xf32>
    tpu.vector_store %arg16[%c0_101, %c0_102, %c0_103], %259 {strides = array<i32>} : memref<2x8x32xf32, #tpu.memory_space<vmem>>, vector<1x8x32xf32>,
    %c1 = arith.constant 1 : index
    %c0_104 = arith.constant 0 : index
    %c0_105 = arith.constant 0 : index
    %260 = vector.load %arg16[%c1, %c0_104, %c0_105] : memref<2x8x32xf32, #tpu.memory_space<vmem>>, vector<1x8x32xf32>
    %261 = vector.shape_cast %260 : vector<1x8x32xf32> to vector<8x32xf32>
    %c0_106 = arith.constant 0 : index
    %c1_107 = arith.constant 1 : index
    %c0_108 = arith.constant 0 : index
    %c0_109 = arith.constant 0 : index
    %262 = vector.load %arg3[%c0_106, %c1_107, %c0_108, %c0_109] : memref<1x2x1x128xf32, #tpu.memory_space<vmem>>, vector<1x1x1x128xf32>
    %263 = vector.shape_cast %262 : vector<1x1x1x128xf32> to vector<1x128xf32>
    %264 = vector.extract_strided_slice %263 {offsets = [0, 0], sizes = [1, 32], strides = [1, 1]} : vector<1x128xf32> to vector<1x32xf32>
    %265 = vector.extract_strided_slice %263 {offsets = [0, 32], sizes = [1, 32], strides = [1, 1]} : vector<1x128xf32> to vector<1x32xf32>
    %266 = vector.extract_strided_slice %263 {offsets = [0, 64], sizes = [1, 32], strides = [1, 1]} : vector<1x128xf32> to vector<1x32xf32>
    %267 = vector.extract_strided_slice %263 {offsets = [0, 96], sizes = [1, 32], strides = [1, 1]} : vector<1x128xf32> to vector<1x32xf32>
    %cst_110 = arith.constant dense<0.000000e+00> : vector<8xf32>
    %268 = vector.multi_reduction <add>, %261, %cst_110 [1] : vector<8x32xf32> to vector<8xf32>
    %269 = vector.shape_cast %268 : vector<8xf32> to vector<8x1xf32>
    %cst_111 = arith.constant 3.200000e+01 : f32
    %270 = vector.broadcast %cst_111 : f32 to vector<8x1xf32>
    %271 = arith.divf %269, %270 : vector<8x1xf32>
    %272 = vector.broadcast %271 : vector<8x1xf32> to vector<8x32xf32>
    %273 = arith.subf %261, %272 : vector<8x32xf32>
    %274 = arith.mulf %273, %273 : vector<8x32xf32>
    %cst_112 = arith.constant dense<0.000000e+00> : vector<8xf32>
    %275 = vector.multi_reduction <add>, %274, %cst_112 [1] : vector<8x32xf32> to vector<8xf32>
    %276 = vector.shape_cast %275 : vector<8xf32> to vector<8x1xf32>
    %cst_113 = arith.constant 3.200000e+01 : f32
    %277 = vector.broadcast %cst_113 : f32 to vector<8x1xf32>
    %278 = arith.divf %276, %277 : vector<8x1xf32>
    %cst_114 = arith.constant 9.99999974E-6 : f32
    %279 = vector.broadcast %cst_114 : f32 to vector<8x1xf32>
    %280 = arith.addf %278, %279 : vector<8x1xf32>
    %281 = math.rsqrt %280 : vector<8x1xf32>
    %282 = vector.broadcast %281 : vector<8x1xf32> to vector<8x32xf32>
    %283 = arith.mulf %273, %282 : vector<8x32xf32>
    %284 = vector.broadcast %5 : vector<1x32xf32> to vector<8x32xf32>
    %285 = arith.mulf %283, %284 : vector<8x32xf32>
    %286 = vector.broadcast %7 : vector<1x32xf32> to vector<8x32xf32>
    %287 = arith.addf %285, %286 : vector<8x32xf32>
    %cst_115 = arith.constant 1.000000e+00 : f32
    %288 = vector.broadcast %cst_115 : f32 to vector<1x32xf32>
    %289 = arith.addf %288, %265 : vector<1x32xf32>
    %290 = vector.broadcast %289 : vector<1x32xf32> to vector<8x32xf32>
    %291 = arith.mulf %287, %290 : vector<8x32xf32>
    %292 = vector.broadcast %264 : vector<1x32xf32> to vector<8x32xf32>
    %293 = arith.addf %291, %292 : vector<8x32xf32>
    %294 = arith.truncf %293 : vector<8x32xf32> to vector<8x32xbf16>
    %cst_116 = arith.constant dense<0.000000e+00> : vector<8x96xf32>
    %295 = tpu.matmul %294, %13, %cst_116 {dimension_numbers = #tpu.dot_dimension_numbers<[1], [0], [0], [1], [0, 0, 1, 1], [], []>} : vector<8x32xbf16>, vector<32x96xbf16>, vector<8x96xf32> -> vector<8x96xf32>
    %296 = vector.broadcast %15 : vector<1x96xf32> to vector<8x96xf32>
    %297 = arith.addf %295, %296 : vector<8x96xf32>
    %298 = vector.extract_strided_slice %297 {offsets = [0, 0], sizes = [8, 32], strides = [1, 1]} : vector<8x96xf32> to vector<8x32xf32>
    %299 = vector.extract_strided_slice %297 {offsets = [0, 32], sizes = [8, 32], strides = [1, 1]} : vector<8x96xf32> to vector<8x32xf32>
    %300 = vector.extract_strided_slice %297 {offsets = [0, 64], sizes = [8, 32], strides = [1, 1]} : vector<8x96xf32> to vector<8x32xf32>
    %cst_117 = arith.constant 0.353553385 : f32
    %301 = vector.broadcast %cst_117 : f32 to vector<8x32xf32>
    %302 = arith.mulf %299, %301 : vector<8x32xf32>
    %303 = arith.truncf %302 : vector<8x32xf32> to vector<8x32xbf16>
    %304 = arith.truncf %298 : vector<8x32xf32> to vector<8x32xbf16>
    %305 = arith.truncf %300 : vector<8x32xf32> to vector<8x32xbf16>
    %306 = vector.extract_strided_slice %303 {offsets = [0, 0], sizes = [8, 8], strides = [1, 1]} : vector<8x32xbf16> to vector<8x8xbf16>
    %307 = vector.extract_strided_slice %304 {offsets = [0, 0], sizes = [8, 8], strides = [1, 1]} : vector<8x32xbf16> to vector<8x8xbf16>
    %308 = vector.extract_strided_slice %305 {offsets = [0, 0], sizes = [8, 8], strides = [1, 1]} : vector<8x32xbf16> to vector<8x8xbf16>
    %cst_118 = arith.constant dense<0.000000e+00> : vector<8x8xf32>
    %309 = tpu.matmul %306, %307, %cst_118 {dimension_numbers = #tpu.dot_dimension_numbers<[1], [1], [0], [0], [0, 0, 1, 0], [], []>} : vector<8x8xbf16>, vector<8x8xbf16>, vector<8x8xf32> -> vector<8x8xf32>
    %310 = arith.addf %309, %3 : vector<8x8xf32>
    %cst_119 = arith.constant dense<0xFF800000> : vector<8xf32>
    %311 = vector.multi_reduction <maximumf>, %310, %cst_119 [1] : vector<8x8xf32> to vector<8xf32>
    %312 = vector.shape_cast %311 : vector<8xf32> to vector<8x1xf32>
    %313 = vector.broadcast %312 : vector<8x1xf32> to vector<8x8xf32>
    %314 = arith.subf %310, %313 : vector<8x8xf32>
    %315 = math.exp %314 : vector<8x8xf32>
    %cst_120 = arith.constant dense<0.000000e+00> : vector<8xf32>
    %316 = vector.multi_reduction <add>, %315, %cst_120 [1] : vector<8x8xf32> to vector<8xf32>
    %317 = vector.shape_cast %316 : vector<8xf32> to vector<8x1xf32>
    %318 = arith.truncf %315 : vector<8x8xf32> to vector<8x8xbf16>
    %cst_121 = arith.constant dense<0.000000e+00> : vector<8x8xf32>
    %319 = tpu.matmul %318, %308, %cst_121 {dimension_numbers = #tpu.dot_dimension_numbers<[1], [0], [0], [1], [0, 0, 1, 1], [], []>} : vector<8x8xbf16>, vector<8x8xbf16>, vector<8x8xf32> -> vector<8x8xf32>
    %320 = tpu.reciprocal %317 {approx = true} : vector<8x1xf32> -> vector<8x1xf32>
    %321 = vector.broadcast %320 : vector<8x1xf32> to vector<8x8xf32>
    %322 = arith.mulf %319, %321 : vector<8x8xf32>
    %323 = vector.extract_strided_slice %303 {offsets = [0, 8], sizes = [8, 8], strides = [1, 1]} : vector<8x32xbf16> to vector<8x8xbf16>
    %324 = vector.extract_strided_slice %304 {offsets = [0, 8], sizes = [8, 8], strides = [1, 1]} : vector<8x32xbf16> to vector<8x8xbf16>
    %325 = vector.extract_strided_slice %305 {offsets = [0, 8], sizes = [8, 8], strides = [1, 1]} : vector<8x32xbf16> to vector<8x8xbf16>
    %cst_122 = arith.constant dense<0.000000e+00> : vector<8x8xf32>
    %326 = tpu.matmul %323, %324, %cst_122 {dimension_numbers = #tpu.dot_dimension_numbers<[1], [1], [0], [0], [0, 0, 1, 0], [], []>} : vector<8x8xbf16>, vector<8x8xbf16>, vector<8x8xf32> -> vector<8x8xf32>
    %327 = arith.addf %326, %3 : vector<8x8xf32>
    %cst_123 = arith.constant dense<0xFF800000> : vector<8xf32>
    %328 = vector.multi_reduction <maximumf>, %327, %cst_123 [1] : vector<8x8xf32> to vector<8xf32>
    %329 = vector.shape_cast %328 : vector<8xf32> to vector<8x1xf32>
    %330 = vector.broadcast %329 : vector<8x1xf32> to vector<8x8xf32>
    %331 = arith.subf %327, %330 : vector<8x8xf32>
    %332 = math.exp %331 : vector<8x8xf32>
    %cst_124 = arith.constant dense<0.000000e+00> : vector<8xf32>
    %333 = vector.multi_reduction <add>, %332, %cst_124 [1] : vector<8x8xf32> to vector<8xf32>
    %334 = vector.shape_cast %333 : vector<8xf32> to vector<8x1xf32>
    %335 = arith.truncf %332 : vector<8x8xf32> to vector<8x8xbf16>
    %cst_125 = arith.constant dense<0.000000e+00> : vector<8x8xf32>
    %336 = tpu.matmul %335, %325, %cst_125 {dimension_numbers = #tpu.dot_dimension_numbers<[1], [0], [0], [1], [0, 0, 1, 1], [], []>} : vector<8x8xbf16>, vector<8x8xbf16>, vector<8x8xf32> -> vector<8x8xf32>
    %337 = tpu.reciprocal %334 {approx = true} : vector<8x1xf32> -> vector<8x1xf32>
    %338 = vector.broadcast %337 : vector<8x1xf32> to vector<8x8xf32>
    %339 = arith.mulf %336, %338 : vector<8x8xf32>
    %340 = vector.extract_strided_slice %303 {offsets = [0, 16], sizes = [8, 8], strides = [1, 1]} : vector<8x32xbf16> to vector<8x8xbf16>
    %341 = vector.extract_strided_slice %304 {offsets = [0, 16], sizes = [8, 8], strides = [1, 1]} : vector<8x32xbf16> to vector<8x8xbf16>
    %342 = vector.extract_strided_slice %305 {offsets = [0, 16], sizes = [8, 8], strides = [1, 1]} : vector<8x32xbf16> to vector<8x8xbf16>
    %cst_126 = arith.constant dense<0.000000e+00> : vector<8x8xf32>
    %343 = tpu.matmul %340, %341, %cst_126 {dimension_numbers = #tpu.dot_dimension_numbers<[1], [1], [0], [0], [0, 0, 1, 0], [], []>} : vector<8x8xbf16>, vector<8x8xbf16>, vector<8x8xf32> -> vector<8x8xf32>
    %344 = arith.addf %343, %3 : vector<8x8xf32>
    %cst_127 = arith.constant dense<0xFF800000> : vector<8xf32>
    %345 = vector.multi_reduction <maximumf>, %344, %cst_127 [1] : vector<8x8xf32> to vector<8xf32>
    %346 = vector.shape_cast %345 : vector<8xf32> to vector<8x1xf32>
    %347 = vector.broadcast %346 : vector<8x1xf32> to vector<8x8xf32>
    %348 = arith.subf %344, %347 : vector<8x8xf32>
    %349 = math.exp %348 : vector<8x8xf32>
    %cst_128 = arith.constant dense<0.000000e+00> : vector<8xf32>
    %350 = vector.multi_reduction <add>, %349, %cst_128 [1] : vector<8x8xf32> to vector<8xf32>
    %351 = vector.shape_cast %350 : vector<8xf32> to vector<8x1xf32>
    %352 = arith.truncf %349 : vector<8x8xf32> to vector<8x8xbf16>
    %cst_129 = arith.constant dense<0.000000e+00> : vector<8x8xf32>
    %353 = tpu.matmul %352, %342, %cst_129 {dimension_numbers = #tpu.dot_dimension_numbers<[1], [0], [0], [1], [0, 0, 1, 1], [], []>} : vector<8x8xbf16>, vector<8x8xbf16>, vector<8x8xf32> -> vector<8x8xf32>
    %354 = tpu.reciprocal %351 {approx = true} : vector<8x1xf32> -> vector<8x1xf32>
    %355 = vector.broadcast %354 : vector<8x1xf32> to vector<8x8xf32>
    %356 = arith.mulf %353, %355 : vector<8x8xf32>
    %357 = vector.extract_strided_slice %303 {offsets = [0, 24], sizes = [8, 8], strides = [1, 1]} : vector<8x32xbf16> to vector<8x8xbf16>
    %358 = vector.extract_strided_slice %304 {offsets = [0, 24], sizes = [8, 8], strides = [1, 1]} : vector<8x32xbf16> to vector<8x8xbf16>
    %359 = vector.extract_strided_slice %305 {offsets = [0, 24], sizes = [8, 8], strides = [1, 1]} : vector<8x32xbf16> to vector<8x8xbf16>
    %cst_130 = arith.constant dense<0.000000e+00> : vector<8x8xf32>
    %360 = tpu.matmul %357, %358, %cst_130 {dimension_numbers = #tpu.dot_dimension_numbers<[1], [1], [0], [0], [0, 0, 1, 0], [], []>} : vector<8x8xbf16>, vector<8x8xbf16>, vector<8x8xf32> -> vector<8x8xf32>
    %361 = arith.addf %360, %3 : vector<8x8xf32>
    %cst_131 = arith.constant dense<0xFF800000> : vector<8xf32>
    %362 = vector.multi_reduction <maximumf>, %361, %cst_131 [1] : vector<8x8xf32> to vector<8xf32>
    %363 = vector.shape_cast %362 : vector<8xf32> to vector<8x1xf32>
    %364 = vector.broadcast %363 : vector<8x1xf32> to vector<8x8xf32>
    %365 = arith.subf %361, %364 : vector<8x8xf32>
    %366 = math.exp %365 : vector<8x8xf32>
    %cst_132 = arith.constant dense<0.000000e+00> : vector<8xf32>
    %367 = vector.multi_reduction <add>, %366, %cst_132 [1] : vector<8x8xf32> to vector<8xf32>
    %368 = vector.shape_cast %367 : vector<8xf32> to vector<8x1xf32>
    %369 = arith.truncf %366 : vector<8x8xf32> to vector<8x8xbf16>
    %cst_133 = arith.constant dense<0.000000e+00> : vector<8x8xf32>
    %370 = tpu.matmul %369, %359, %cst_133 {dimension_numbers = #tpu.dot_dimension_numbers<[1], [0], [0], [1], [0, 0, 1, 1], [], []>} : vector<8x8xbf16>, vector<8x8xbf16>, vector<8x8xf32> -> vector<8x8xf32>
    %371 = tpu.reciprocal %368 {approx = true} : vector<8x1xf32> -> vector<8x1xf32>
    %372 = vector.broadcast %371 : vector<8x1xf32> to vector<8x8xf32>
    %373 = arith.mulf %370, %372 : vector<8x8xf32>
    %374 = tpu.concatenate %322, %339, %356, %373 in 1 : vector<8x8xf32>, vector<8x8xf32>, vector<8x8xf32>, vector<8x8xf32> -> vector<8x32xf32>
    %375 = arith.addf %261, %374 : vector<8x32xf32>
    %cst_134 = arith.constant dense<0.000000e+00> : vector<8xf32>
    %376 = vector.multi_reduction <add>, %375, %cst_134 [1] : vector<8x32xf32> to vector<8xf32>
    %377 = vector.shape_cast %376 : vector<8xf32> to vector<8x1xf32>
    %cst_135 = arith.constant 3.200000e+01 : f32
    %378 = vector.broadcast %cst_135 : f32 to vector<8x1xf32>
    %379 = arith.divf %377, %378 : vector<8x1xf32>
    %380 = vector.broadcast %379 : vector<8x1xf32> to vector<8x32xf32>
    %381 = arith.subf %375, %380 : vector<8x32xf32>
    %382 = arith.mulf %381, %381 : vector<8x32xf32>
    %cst_136 = arith.constant dense<0.000000e+00> : vector<8xf32>
    %383 = vector.multi_reduction <add>, %382, %cst_136 [1] : vector<8x32xf32> to vector<8xf32>
    %384 = vector.shape_cast %383 : vector<8xf32> to vector<8x1xf32>
    %cst_137 = arith.constant 3.200000e+01 : f32
    %385 = vector.broadcast %cst_137 : f32 to vector<8x1xf32>
    %386 = arith.divf %384, %385 : vector<8x1xf32>
    %cst_138 = arith.constant 9.99999974E-6 : f32
    %387 = vector.broadcast %cst_138 : f32 to vector<8x1xf32>
    %388 = arith.addf %386, %387 : vector<8x1xf32>
    %389 = math.rsqrt %388 : vector<8x1xf32>
    %390 = vector.broadcast %389 : vector<8x1xf32> to vector<8x32xf32>
    %391 = arith.mulf %381, %390 : vector<8x32xf32>
    %392 = vector.broadcast %9 : vector<1x32xf32> to vector<8x32xf32>
    %393 = arith.mulf %391, %392 : vector<8x32xf32>
    %394 = vector.broadcast %11 : vector<1x32xf32> to vector<8x32xf32>
    %395 = arith.addf %393, %394 : vector<8x32xf32>
    %cst_139 = arith.constant 1.000000e+00 : f32
    %396 = vector.broadcast %cst_139 : f32 to vector<1x32xf32>
    %397 = arith.addf %396, %267 : vector<1x32xf32>
    %398 = vector.broadcast %397 : vector<1x32xf32> to vector<8x32xf32>
    %399 = arith.mulf %395, %398 : vector<8x32xf32>
    %400 = vector.broadcast %266 : vector<1x32xf32> to vector<8x32xf32>
    %401 = arith.addf %399, %400 : vector<8x32xf32>
    %402 = arith.truncf %401 : vector<8x32xf32> to vector<8x32xbf16>
    %cst_140 = arith.constant 0.000000e+00 : f32
    %403 = vector.broadcast %cst_140 : f32 to vector<8x32xf32>
    %c0_141 = arith.constant 0 : index
    %c0_142 = arith.constant 0 : index
    %c0_143 = arith.constant 0 : index
    %404 = vector.load %arg11[%c0_141, %c0_142, %c0_143] : memref<1x32x128xbf16, #tpu.memory_space<vmem>>, vector<1x32x128xbf16>
    %405 = vector.shape_cast %404 : vector<1x32x128xbf16> to vector<32x128xbf16>
    %c0_144 = arith.constant 0 : index
    %c0_145 = arith.constant 0 : index
    %c0_146 = arith.constant 0 : index
    %406 = vector.load %arg12[%c0_144, %c0_145, %c0_146] : memref<1x1x128xf32, #tpu.memory_space<vmem>>, vector<1x1x128xf32>
    %407 = vector.shape_cast %406 : vector<1x1x128xf32> to vector<1x128xf32>
    %c0_147 = arith.constant 0 : index
    %c0_148 = arith.constant 0 : index
    %c0_149 = arith.constant 0 : index
    %408 = vector.load %arg13[%c0_147, %c0_148, %c0_149] : memref<1x128x32xbf16, #tpu.memory_space<vmem>>, vector<1x128x32xbf16>
    %409 = vector.shape_cast %408 : vector<1x128x32xbf16> to vector<128x32xbf16>
    %cst_150 = arith.constant dense<0.000000e+00> : vector<8x128xf32>
    %410 = tpu.matmul %402, %405, %cst_150 {dimension_numbers = #tpu.dot_dimension_numbers<[1], [0], [0], [1], [0, 0, 1, 1], [], []>} : vector<8x32xbf16>, vector<32x128xbf16>, vector<8x128xf32> -> vector<8x128xf32>
    %411 = vector.broadcast %407 : vector<1x128xf32> to vector<8x128xf32>
    %412 = arith.addf %410, %411 : vector<8x128xf32>
    %cst_151 = arith.constant 5.000000e-01 : f32
    %413 = vector.broadcast %cst_151 : f32 to vector<8x128xf32>
    %414 = arith.mulf %413, %412 : vector<8x128xf32>
    %cst_152 = arith.constant 0.707106769 : f32
    %415 = vector.broadcast %cst_152 : f32 to vector<8x128xf32>
    %416 = arith.mulf %412, %415 : vector<8x128xf32>
    %cst_153 = arith.constant 0.000000e+00 : f32
    %417 = vector.broadcast %cst_153 : f32 to vector<8x128xf32>
    %418 = arith.cmpf oge, %416, %417 : vector<8x128xf32>
    %cst_154 = arith.constant 1.000000e+00 : f32
    %cst_155 = arith.constant -1.000000e+00 : f32
    %419 = vector.broadcast %cst_154 : f32 to vector<8x128xf32>
    %420 = vector.broadcast %cst_155 : f32 to vector<8x128xf32>
    %421 = arith.select %418, %419, %420 : vector<8x128xi1>, vector<8x128xf32>
    %422 = math.absf %416 : vector<8x128xf32>
    %cst_156 = arith.constant 0.327591091 : f32
    %423 = vector.broadcast %cst_156 : f32 to vector<8x128xf32>
    %424 = arith.mulf %423, %422 : vector<8x128xf32>
    %cst_157 = arith.constant 1.000000e+00 : f32
    %425 = vector.broadcast %cst_157 : f32 to vector<8x128xf32>
    %426 = arith.addf %425, %424 : vector<8x128xf32>
    %427 = tpu.reciprocal %426 {approx = true} : vector<8x128xf32> -> vector<8x128xf32>
    %cst_158 = arith.constant 1.06140542 : f32
    %428 = vector.broadcast %cst_158 : f32 to vector<8x128xf32>
    %429 = arith.mulf %428, %427 : vector<8x128xf32>
    %cst_159 = arith.constant -1.45315206 : f32
    %430 = vector.broadcast %cst_159 : f32 to vector<8x128xf32>
    %431 = arith.addf %429, %430 : vector<8x128xf32>
    %432 = arith.mulf %431, %427 : vector<8x128xf32>
    %cst_160 = arith.constant 1.42141378 : f32
    %433 = vector.broadcast %cst_160 : f32 to vector<8x128xf32>
    %434 = arith.addf %432, %433 : vector<8x128xf32>
    %435 = arith.mulf %434, %427 : vector<8x128xf32>
    %cst_161 = arith.constant -0.284496725 : f32
    %436 = vector.broadcast %cst_161 : f32 to vector<8x128xf32>
    %437 = arith.addf %435, %436 : vector<8x128xf32>
    %438 = arith.mulf %437, %427 : vector<8x128xf32>
    %cst_162 = arith.constant 0.254829586 : f32
    %439 = vector.broadcast %cst_162 : f32 to vector<8x128xf32>
    %440 = arith.addf %438, %439 : vector<8x128xf32>
    %441 = arith.mulf %440, %427 : vector<8x128xf32>
    %cst_163 = arith.constant 0.000000e+00 : f32
    %442 = vector.broadcast %cst_163 : f32 to vector<8x128xf32>
    %443 = arith.subf %442, %422 : vector<8x128xf32>
    %444 = arith.mulf %443, %422 : vector<8x128xf32>
    %445 = math.exp %444 : vector<8x128xf32>
    %446 = arith.mulf %441, %445 : vector<8x128xf32>
    %cst_164 = arith.constant 1.000000e+00 : f32
    %447 = vector.broadcast %cst_164 : f32 to vector<8x128xf32>
    %448 = arith.subf %447, %446 : vector<8x128xf32>
    %449 = arith.mulf %421, %448 : vector<8x128xf32>
    %cst_165 = arith.constant 1.000000e+00 : f32
    %450 = vector.broadcast %cst_165 : f32 to vector<8x128xf32>
    %451 = arith.addf %450, %449 : vector<8x128xf32>
    %452 = arith.mulf %414, %451 : vector<8x128xf32>
    %453 = arith.truncf %452 : vector<8x128xf32> to vector<8x128xbf16>
    %cst_166 = arith.constant dense<0.000000e+00> : vector<8x32xf32>
    %454 = tpu.matmul %453, %409, %cst_166 {dimension_numbers = #tpu.dot_dimension_numbers<[1], [0], [0], [1], [0, 0, 1, 1], [], []>} : vector<8x128xbf16>, vector<128x32xbf16>, vector<8x32xf32> -> vector<8x32xf32>
    %455 = arith.addf %403, %454 : vector<8x32xf32>
    %456 = vector.broadcast %17 : vector<1x32xf32> to vector<8x32xf32>
    %457 = arith.addf %455, %456 : vector<8x32xf32>
    %cst_167 = arith.constant 5.000000e-01 : f32
    %458 = vector.broadcast %cst_167 : f32 to vector<8x32xf32>
    %459 = arith.mulf %458, %457 : vector<8x32xf32>
    %cst_168 = arith.constant 0.707106769 : f32
    %460 = vector.broadcast %cst_168 : f32 to vector<8x32xf32>
    %461 = arith.mulf %457, %460 : vector<8x32xf32>
    %cst_169 = arith.constant 0.000000e+00 : f32
    %462 = vector.broadcast %cst_169 : f32 to vector<8x32xf32>
    %463 = arith.cmpf oge, %461, %462 : vector<8x32xf32>
    %cst_170 = arith.constant 1.000000e+00 : f32
    %cst_171 = arith.constant -1.000000e+00 : f32
    %464 = vector.broadcast %cst_170 : f32 to vector<8x32xf32>
    %465 = vector.broadcast %cst_171 : f32 to vector<8x32xf32>
    %466 = arith.select %463, %464, %465 : vector<8x32xi1>, vector<8x32xf32>
    %467 = math.absf %461 : vector<8x32xf32>
    %cst_172 = arith.constant 0.327591091 : f32
    %468 = vector.broadcast %cst_172 : f32 to vector<8x32xf32>
    %469 = arith.mulf %468, %467 : vector<8x32xf32>
    %cst_173 = arith.constant 1.000000e+00 : f32
    %470 = vector.broadcast %cst_173 : f32 to vector<8x32xf32>
    %471 = arith.addf %470, %469 : vector<8x32xf32>
    %472 = tpu.reciprocal %471 {approx = true} : vector<8x32xf32> -> vector<8x32xf32>
    %cst_174 = arith.constant 1.06140542 : f32
    %473 = vector.broadcast %cst_174 : f32 to vector<8x32xf32>
    %474 = arith.mulf %473, %472 : vector<8x32xf32>
    %cst_175 = arith.constant -1.45315206 : f32
    %475 = vector.broadcast %cst_175 : f32 to vector<8x32xf32>
    %476 = arith.addf %474, %475 : vector<8x32xf32>
    %477 = arith.mulf %476, %472 : vector<8x32xf32>
    %cst_176 = arith.constant 1.42141378 : f32
    %478 = vector.broadcast %cst_176 : f32 to vector<8x32xf32>
    %479 = arith.addf %477, %478 : vector<8x32xf32>
    %480 = arith.mulf %479, %472 : vector<8x32xf32>
    %cst_177 = arith.constant -0.284496725 : f32
    %481 = vector.broadcast %cst_177 : f32 to vector<8x32xf32>
    %482 = arith.addf %480, %481 : vector<8x32xf32>
    %483 = arith.mulf %482, %472 : vector<8x32xf32>
    %cst_178 = arith.constant 0.254829586 : f32
    %484 = vector.broadcast %cst_178 : f32 to vector<8x32xf32>
    %485 = arith.addf %483, %484 : vector<8x32xf32>
    %486 = arith.mulf %485, %472 : vector<8x32xf32>
    %cst_179 = arith.constant 0.000000e+00 : f32
    %487 = vector.broadcast %cst_179 : f32 to vector<8x32xf32>
    %488 = arith.subf %487, %467 : vector<8x32xf32>
    %489 = arith.mulf %488, %467 : vector<8x32xf32>
    %490 = math.exp %489 : vector<8x32xf32>
    %491 = arith.mulf %486, %490 : vector<8x32xf32>
    %cst_180 = arith.constant 1.000000e+00 : f32
    %492 = vector.broadcast %cst_180 : f32 to vector<8x32xf32>
    %493 = arith.subf %492, %491 : vector<8x32xf32>
    %494 = arith.mulf %466, %493 : vector<8x32xf32>
    %cst_181 = arith.constant 1.000000e+00 : f32
    %495 = vector.broadcast %cst_181 : f32 to vector<8x32xf32>
    %496 = arith.addf %495, %494 : vector<8x32xf32>
    %497 = arith.mulf %459, %496 : vector<8x32xf32>
    %498 = arith.addf %375, %497 : vector<8x32xf32>
    %c1_182 = arith.constant 1 : index
    %c0_183 = arith.constant 0 : index
    %c0_184 = arith.constant 0 : index
    %499 = vector.load %arg16[%c1_182, %c0_183, %c0_184] : memref<2x8x32xf32, #tpu.memory_space<vmem>>, vector<1x8x32xf32>
    %500 = vector.shape_cast %499 : vector<1x8x32xf32> to vector<8x32xf32>
    %501 = vector.shape_cast %498 : vector<8x32xf32> to vector<1x8x32xf32>
    tpu.vector_store %arg16[%c1_182, %c0_183, %c0_184], %501 {strides = array<i32>} : memref<2x8x32xf32, #tpu.memory_space<vmem>>, vector<1x8x32xf32>,
    %c1_i32 = arith.constant 1 : i32
    %502 = arith.cmpi eq, %arg1, %c1_i32 : i32
    %503 = arith.extui %502 : i1 to i32
    %c0_i32_185 = arith.constant 0 : i32
    %504 = arith.cmpi ne, %503, %c0_i32_185 : i32
    scf.if %504 {
      %c0_186 = arith.constant 0 : index
      %c0_187 = arith.constant 0 : index
      %c0_188 = arith.constant 0 : index
      %505 = vector.load %arg16[%c0_186, %c0_187, %c0_188] : memref<2x8x32xf32, #tpu.memory_space<vmem>>, vector<2x8x32xf32>
      %c0_189 = arith.constant 0 : index
      %c0_190 = arith.constant 0 : index
      %c0_191 = arith.constant 0 : index
      %506 = vector.load %arg15[%c0_189, %c0_190, %c0_191] : memref<2x8x32xf32, #tpu.memory_space<vmem>>, vector<2x8x32xf32>
      tpu.vector_store %arg15[%c0_189, %c0_190, %c0_191], %505 {strides = array<i32>} : memref<2x8x32xf32, #tpu.memory_space<vmem>>, vector<2x8x32xf32>,
    } else {
    }
    return
  }
  func.func @transform_0(%arg0: i32, %arg1: i32) -> (i32, i32, i32) {
    %c0_i32 = arith.constant 0 : i32
    %c0_i32_0 = arith.constant 0 : i32
    %c0_i32_1 = arith.constant 0 : i32
    return %arg0, %c0_i32, %c0_i32_0 : i32, i32, i32
  }
  func.func @transform_1(%arg0: i32, %arg1: i32) -> (i32, i32, i32, i32) {
    %c0_i32 = arith.constant 0 : i32
    %c0_i32_0 = arith.constant 0 : i32
    %c0_i32_1 = arith.constant 0 : i32
    return %arg1, %arg0, %c0_i32, %c0_i32_0 : i32, i32, i32, i32
  }
  func.func @transform_2(%arg0: i32, %arg1: i32) -> (i32, i32) {
    %c0_i32 = arith.constant 0 : i32
    %c0_i32_0 = arith.constant 0 : i32
    %c0_i32_1 = arith.constant 0 : i32
    return %c0_i32, %c0_i32_0 : i32, i32
  }
  func.func @transform_3(%arg0: i32, %arg1: i32) -> (i32, i32, i32) {
    %c0_i32 = arith.constant 0 : i32
    %c0_i32_0 = arith.constant 0 : i32
    %c0_i32_1 = arith.constant 0 : i32
    return %arg1, %c0_i32, %c0_i32_0 : i32, i32, i32
  }
  func.func @transform_4(%arg0: i32, %arg1: i32) -> (i32, i32, i32) {
    %c0_i32 = arith.constant 0 : i32
    %c0_i32_0 = arith.constant 0 : i32
    %c0_i32_1 = arith.constant 0 : i32
    return %arg1, %c0_i32, %c0_i32_0 : i32, i32, i32
  }
  func.func @transform_5(%arg0: i32, %arg1: i32) -> (i32, i32, i32) {
    %c0_i32 = arith.constant 0 : i32
    %c0_i32_0 = arith.constant 0 : i32
    %c0_i32_1 = arith.constant 0 : i32
    return %arg1, %c0_i32, %c0_i32_0 : i32, i32, i32
  }
  func.func @transform_6(%arg0: i32, %arg1: i32) -> (i32, i32, i32) {
    %c0_i32 = arith.constant 0 : i32
    %c0_i32_0 = arith.constant 0 : i32
    %c0_i32_1 = arith.constant 0 : i32
    return %arg1, %c0_i32, %c0_i32_0 : i32, i32, i32
  }
  func.func @transform_7(%arg0: i32, %arg1: i32) -> (i32, i32, i32) {
    %c0_i32 = arith.constant 0 : i32
    %c0_i32_0 = arith.constant 0 : i32
    %c0_i32_1 = arith.constant 0 : i32
    return %arg1, %c0_i32, %c0_i32_0 : i32, i32, i32
  }
  func.func @transform_8(%arg0: i32, %arg1: i32) -> (i32, i32, i32) {
    %c0_i32 = arith.constant 0 : i32
    %c0_i32_0 = arith.constant 0 : i32
    %c0_i32_1 = arith.constant 0 : i32
    return %arg1, %c0_i32, %c0_i32_0 : i32, i32, i32
  }
  func.func @transform_9(%arg0: i32, %arg1: i32) -> (i32, i32, i32) {
    %c0_i32 = arith.constant 0 : i32
    %c0_i32_0 = arith.constant 0 : i32
    %c0_i32_1 = arith.constant 0 : i32
    return %arg1, %c0_i32, %c0_i32_0 : i32, i32, i32
  }
  func.func @transform_10(%arg0: i32, %arg1: i32) -> (i32, i32, i32) {
    %c0_i32 = arith.constant 0 : i32
    %c0_i32_0 = arith.constant 0 : i32
    %c0_i32_1 = arith.constant 0 : i32
    return %arg1, %c0_i32, %c0_i32_0 : i32, i32, i32
  }
  func.func @transform_11(%arg0: i32, %arg1: i32) -> (i32, i32, i32) {
    %c0_i32 = arith.constant 0 : i32
    %c0_i32_0 = arith.constant 0 : i32
    %c0_i32_1 = arith.constant 0 : i32
    return %arg1, %c0_i32, %c0_i32_0 : i32, i32, i32
  }
  func.func @transform_12(%arg0: i32, %arg1: i32) -> (i32, i32, i32) {
    %c0_i32 = arith.constant 0 : i32
    %c0_i32_0 = arith.constant 0 : i32
    %c0_i32_1 = arith.constant 0 : i32
    return %arg1, %c0_i32, %c0_i32_0 : i32, i32, i32
  }
  func.func @transform_13(%arg0: i32, %arg1: i32) -> (i32, i32, i32) {
    %c0_i32 = arith.constant 0 : i32
    %c0_i32_0 = arith.constant 0 : i32
    %c0_i32_1 = arith.constant 0 : i32
    return %arg0, %c0_i32, %c0_i32_0 : i32, i32, i32
  }
}

</mosaic_0001>

<llo_original>
// kernel: tpu_custom_call.1
$region0: #{tpu_custom_call.1}
  #allocation0 [shape = 'u32[]', space=smem, size = 0x4, offset = 0x4, fixed_abs, tag = 'smem constant byte address 0x4 - core index']
  #allocation1 [shape = 'u32[72,128]{1,0:T(1,128)}', space=vmem, size = 0x9000, scoped, tag = 'internal scratch']
  #allocation2 [shape = 'f32[2,8,32]{2,1,0:T(8,128)}', space=vmem, size = 0x2000, scoped, tag = 'scratch operand']
  %s0 = inlined_call_operand.vmem [shape: f32[2,8,32], index: 0, kind: input, shape index: {}]
  %s1 = inlined_call_operand.vmem [shape: f32[2,2,1,128], index: 1, kind: input, shape index: {}]
  %s2 = inlined_call_operand.vmem [shape: f32[8,8], index: 2, kind: input, shape index: {}]
  %s3 = inlined_call_operand.vmem [shape: f32[2,1,32], index: 3, kind: input, shape index: {}]
  %s4 = inlined_call_operand.vmem [shape: f32[2,1,32], index: 4, kind: input, shape index: {}]
  %s5 = inlined_call_operand.vmem [shape: f32[2,1,32], index: 5, kind: input, shape index: {}]
  %s6 = inlined_call_operand.vmem [shape: f32[2,1,32], index: 6, kind: input, shape index: {}]
  %s7 = inlined_call_operand.vmem [shape: bf16[2,32,96], index: 7, kind: input, shape index: {}]
  %s8 = inlined_call_operand.vmem [shape: f32[2,1,96], index: 8, kind: input, shape index: {}]
  %s9 = inlined_call_operand.vmem [shape: bf16[2,32,128], index: 9, kind: input, shape index: {}]
  %s10 = inlined_call_operand.vmem [shape: f32[2,1,128], index: 10, kind: input, shape index: {}]
  %s11 = inlined_call_operand.vmem [shape: bf16[2,128,32], index: 11, kind: input, shape index: {}]
  %s12 = inlined_call_operand.vmem [shape: f32[2,1,32], index: 12, kind: input, shape index: {}]
  %s13 = inlined_call_operand.hbm [shape: f32[2,8,32], index: 13, kind: output, shape index: {}]
  %s14 = sld [smem:[#allocation0]]
  $region93: #{tpu_custom_call.1} parent=0
    _
  %s16 = ssub.s32 1, %s14
  %s17 = scalar_select 0, %s16, %s14
  $region1: #{tpu_custom_call.1} parent=0
    #allocation3 [shape = 'u8[8192]{0}', space=vmem, size = 0x2000, scoped, tag = 'output window, operand 0, single buffered']
    #allocation4 [shape = 's32[2]{0}', space=sflag, size = 0x8, scoped, tag = 'scoped memory for tpu_custom_call.1']
    %18 = vsyncpa [#allocation4], 0
    loop: start=0, step=1, limit=4
    $region2: #{tpu_custom_call.1} parent=1 // loop_pre_header
      _
    $region3: #{tpu_custom_call.1} parent=1 // loop_header
      %s20 = sphi 0, %s24
      %p21 = scmp.ge.s32.totalorder %s20, 4
      %s27 = sphi 0, %s39
      %s28 = sphi 0, %s35
      %s29 = sphi 0, %s27
      %s30 = sphi 0, %s28
      %s31 = sphi 0, %s29
      %s32 = sphi 0, %s30
      %s42 = sphi 0, %s44
      %s45 = sphi 0, %s42
      %s46 = sphi 0, %s45
      %s62 = sphi 0, %s46
      %s70 = sphi 0, %s72
      %s73 = sphi 0, %s70
      %s74 = sphi 0, %s73
      %s90 = sphi 0, %s74
      %s94 = sphi 0, %s94
      %s96 = sphi 0, %s94
      %s97 = sphi 0, %s96
      %s111 = sphi 0, %s97
      %s117 = sphi 0, %s119
      %s120 = sphi 0, %s117
      %s121 = sphi 0, %s120
      %s137 = sphi 0, %s121
      %s143 = sphi 0, %s145
      %s146 = sphi 0, %s143
      %s147 = sphi 0, %s146
      %s163 = sphi 0, %s147
      %s169 = sphi 0, %s171
      %s172 = sphi 0, %s169
      %s173 = sphi 0, %s172
      %s189 = sphi 0, %s173
      %s195 = sphi 0, %s197
      %s198 = sphi 0, %s195
      %s199 = sphi 0, %s198
      %s215 = sphi 0, %s199
      %s221 = sphi 0, %s223
      %s224 = sphi 0, %s221
      %s225 = sphi 0, %s224
      %s241 = sphi 0, %s225
      %s247 = sphi 0, %s249
      %s250 = sphi 0, %s247
      %s251 = sphi 0, %s250
      %s267 = sphi 0, %s251
      %s273 = sphi 0, %s275
      %s276 = sphi 0, %s273
      %s277 = sphi 0, %s276
      %s293 = sphi 0, %s277
      %s299 = sphi 0, %s301
      %s302 = sphi 0, %s299
      %s303 = sphi 0, %s302
      %s319 = sphi 0, %s303
      %s325 = sphi 0, %s327
      %s328 = sphi 0, %s325
      %s329 = sphi 0, %s328
      %s345 = sphi 0, %s329
      %s351 = sphi 0, %s353
      %s354 = sphi 0, %s351
      %s355 = sphi 0, %s354
      %s371 = sphi 0, %s355
      %s377 = sphi 0, %s379
      %s380 = sphi 0, %s377
      %s381 = sphi 0, %s380
      %s397 = sphi 0, %s381
    $region4: #{tpu_custom_call.1} parent=1 // loop_header_branch
      %23 = sbr.rel (%p21) target = $region8
    $region5: #{tpu_custom_call.1} parent=1 // loop_body
      %s25 = ssub.s32 %s20, 1
      %s26 = ssub.s32 %s20, 2
      %s33 = sadd.s32 1, %s28
      %p34 = scmp.ge.s32.totalorder %s33, 2
      %s35 = scalar_select %p34, 0, %s33
      %s36 = sadd.s32 1, %s27
      %s37 = scalar_select %p34, %s36, %s27
      %p38 = scmp.ge.s32.totalorder %s37, 1
      %s39 = scalar_select %p38, 0, %s37
      %s40 = ssub.s32 %s27, %s39
      %p41 = scmp.eq.s32.totalorder %s40, 0
      %s43 = sadd.s32 %s42, 1
      %s44 = scalar_select %p41, %s42, %s43
      %p47 = pneg %p41
      %p48 = scmp.eq.s32.totalorder %s20, 1
      %p49 = por %p47, %p48
      %p50 = scmp.ne.s32.totalorder %s42, %s45
      %p51 = scmp.eq.s32.totalorder %s20, 0
      %p52 = por %p50, %p51
      %p53 = scmp.ne.s32.totalorder %s42, %s45
      %p54 = scmp.eq.s32.totalorder %s25, 1
      %p55 = por %p53, %p54
      %p56 = scmp.ne.s32.totalorder %s45, %s46
      %p57 = scmp.eq.s32.totalorder %s25, 0
      %p58 = por %p56, %p57
      %p59 = scmp.ne.s32.totalorder %s45, %s46
      %p60 = scmp.eq.s32.totalorder %s26, 1
      %p61 = por %p59, %p60
      %p63 = scmp.ne.s32.totalorder %s46, %s62
      %p64 = scmp.eq.s32.totalorder %s26, 0
      %p65 = por %p63, %p64
      %s66 = ssub.s32 %s28, %s35
      %s67 = ssub.s32 %s27, %s39
      %s68 = sor.u32 %s66, %s67
      %p69 = scmp.eq.s32.totalorder %s68, 0
      %s71 = sadd.s32 %s70, 1
      %s72 = scalar_select %p69, %s70, %s71
      %p75 = pneg %p69
      %p76 = scmp.eq.s32.totalorder %s20, 1
      %p77 = por %p75, %p76
      %p78 = scmp.ne.s32.totalorder %s70, %s73
      %p79 = scmp.eq.s32.totalorder %s20, 0
      %p80 = por %p78, %p79
      %p81 = scmp.ne.s32.totalorder %s70, %s73
      %p82 = scmp.eq.s32.totalorder %s25, 1
      %p83 = por %p81, %p82
      %p84 = scmp.ne.s32.totalorder %s73, %s74
      %p85 = scmp.eq.s32.totalorder %s25, 0
      %p86 = por %p84, %p85
      %p87 = scmp.ne.s32.totalorder %s73, %s74
      %p88 = scmp.eq.s32.totalorder %s26, 1
      %p89 = por %p87, %p88
      %p91 = scmp.ne.s32.totalorder %s74, %s90
      %p92 = scmp.eq.s32.totalorder %s26, 0
      %p93 = por %p91, %p92
      %s95 = sadd.s32 %s94, 1
      %p98 = scmp.eq.s32.totalorder %s20, 1
      %p99 = scmp.ne.s32.totalorder %s94, %s96
      %p100 = scmp.eq.s32.totalorder %s20, 0
      %p101 = por %p99, %p100
      %p102 = scmp.ne.s32.totalorder %s94, %s96
      %p103 = scmp.eq.s32.totalorder %s25, 1
      %p104 = por %p102, %p103
      %p105 = scmp.ne.s32.totalorder %s96, %s97
      %p106 = scmp.eq.s32.totalorder %s25, 0
      %p107 = por %p105, %p106
      %p108 = scmp.ne.s32.totalorder %s96, %s97
      %p109 = scmp.eq.s32.totalorder %s26, 1
      %p110 = por %p108, %p109
      %p112 = scmp.ne.s32.totalorder %s97, %s111
      %p113 = scmp.eq.s32.totalorder %s26, 0
      %p114 = por %p112, %p113
      %s115 = ssub.s32 %s28, %s35
      %p116 = scmp.eq.s32.totalorder %s115, 0
      %s118 = sadd.s32 %s117, 1
      %s119 = scalar_select %p116, %s117, %s118
      %p122 = pneg %p116
      %p123 = scmp.eq.s32.totalorder %s20, 1
      %p124 = por %p122, %p123
      %p125 = scmp.ne.s32.totalorder %s117, %s120
      %p126 = scmp.eq.s32.totalorder %s20, 0
      %p127 = por %p125, %p126
      %p128 = scmp.ne.s32.totalorder %s117, %s120
      %p129 = scmp.eq.s32.totalorder %s25, 1
      %p130 = por %p128, %p129
      %p131 = scmp.ne.s32.totalorder %s120, %s121
      %p132 = scmp.eq.s32.totalorder %s25, 0
      %p133 = por %p131, %p132
      %p134 = scmp.ne.s32.totalorder %s120, %s121
      %p135 = scmp.eq.s32.totalorder %s26, 1
      %p136 = por %p134, %p135
      %p138 = scmp.ne.s32.totalorder %s121, %s137
      %p139 = scmp.eq.s32.totalorder %s26, 0
      %p140 = por %p138, %p139
      %s141 = ssub.s32 %s28, %s35
      %p142 = scmp.eq.s32.totalorder %s141, 0
      %s144 = sadd.s32 %s143, 1
      %s145 = scalar_select %p142, %s143, %s144
      %p148 = pneg %p142
      %p149 = scmp.eq.s32.totalorder %s20, 1
      %p150 = por %p148, %p149
      %p151 = scmp.ne.s32.totalorder %s143, %s146
      %p152 = scmp.eq.s32.totalorder %s20, 0
      %p153 = por %p151, %p152
      %p154 = scmp.ne.s32.totalorder %s143, %s146
      %p155 = scmp.eq.s32.totalorder %s25, 1
      %p156 = por %p154, %p155
      %p157 = scmp.ne.s32.totalorder %s146, %s147
      %p158 = scmp.eq.s32.totalorder %s25, 0
      %p159 = por %p157, %p158
      %p160 = scmp.ne.s32.totalorder %s146, %s147
      %p161 = scmp.eq.s32.totalorder %s26, 1
      %p162 = por %p160, %p161
      %p164 = scmp.ne.s32.totalorder %s147, %s163
      %p165 = scmp.eq.s32.totalorder %s26, 0
      %p166 = por %p164, %p165
      %s167 = ssub.s32 %s28, %s35
      %p168 = scmp.eq.s32.totalorder %s167, 0
      %s170 = sadd.s32 %s169, 1
      %s171 = scalar_select %p168, %s169, %s170
      %p174 = pneg %p168
      %p175 = scmp.eq.s32.totalorder %s20, 1
      %p176 = por %p174, %p175
      %p177 = scmp.ne.s32.totalorder %s169, %s172
      %p178 = scmp.eq.s32.totalorder %s20, 0
      %p179 = por %p177, %p178
      %p180 = scmp.ne.s32.totalorder %s169, %s172
      %p181 = scmp.eq.s32.totalorder %s25, 1
      %p182 = por %p180, %p181
      %p183 = scmp.ne.s32.totalorder %s172, %s173
      %p184 = scmp.eq.s32.totalorder %s25, 0
      %p185 = por %p183, %p184
      %p186 = scmp.ne.s32.totalorder %s172, %s173
      %p187 = scmp.eq.s32.totalorder %s26, 1
      %p188 = por %p186, %p187
      %p190 = scmp.ne.s32.totalorder %s173, %s189
      %p191 = scmp.eq.s32.totalorder %s26, 0
      %p192 = por %p190, %p191
      %s193 = ssub.s32 %s28, %s35
      %p194 = scmp.eq.s32.totalorder %s193, 0
      %s196 = sadd.s32 %s195, 1
      %s197 = scalar_select %p194, %s195, %s196
      %p200 = pneg %p194
      %p201 = scmp.eq.s32.totalorder %s20, 1
      %p202 = por %p200, %p201
      %p203 = scmp.ne.s32.totalorder %s195, %s198
      %p204 = scmp.eq.s32.totalorder %s20, 0
      %p205 = por %p203, %p204
      %p206 = scmp.ne.s32.totalorder %s195, %s198
      %p207 = scmp.eq.s32.totalorder %s25, 1
      %p208 = por %p206, %p207
      %p209 = scmp.ne.s32.totalorder %s198, %s199
      %p210 = scmp.eq.s32.totalorder %s25, 0
      %p211 = por %p209, %p210
      %p212 = scmp.ne.s32.totalorder %s198, %s199
      %p213 = scmp.eq.s32.totalorder %s26, 1
      %p214 = por %p212, %p213
      %p216 = scmp.ne.s32.totalorder %s199, %s215
      %p217 = scmp.eq.s32.totalorder %s26, 0
      %p218 = por %p216, %p217
      %s219 = ssub.s32 %s28, %s35
      %p220 = scmp.eq.s32.totalorder %s219, 0
      %s222 = sadd.s32 %s221, 1
      %s223 = scalar_select %p220, %s221, %s222
      %p226 = pneg %p220
      %p227 = scmp.eq.s32.totalorder %s20, 1
      %p228 = por %p226, %p227
      %p229 = scmp.ne.s32.totalorder %s221, %s224
      %p230 = scmp.eq.s32.totalorder %s20, 0
      %p231 = por %p229, %p230
      %p232 = scmp.ne.s32.totalorder %s221, %s224
      %p233 = scmp.eq.s32.totalorder %s25, 1
      %p234 = por %p232, %p233
      %p235 = scmp.ne.s32.totalorder %s224, %s225
      %p236 = scmp.eq.s32.totalorder %s25, 0
      %p237 = por %p235, %p236
      %p238 = scmp.ne.s32.totalorder %s224, %s225
      %p239 = scmp.eq.s32.totalorder %s26, 1
      %p240 = por %p238, %p239
      %p242 = scmp.ne.s32.totalorder %s225, %s241
      %p243 = scmp.eq.s32.totalorder %s26, 0
      %p244 = por %p242, %p243
      %s245 = ssub.s32 %s28, %s35
      %p246 = scmp.eq.s32.totalorder %s245, 0
      %s248 = sadd.s32 %s247, 1
      %s249 = scalar_select %p246, %s247, %s248
      %p252 = pneg %p246
      %p253 = scmp.eq.s32.totalorder %s20, 1
      %p254 = por %p252, %p253
      %p255 = scmp.ne.s32.totalorder %s247, %s250
      %p256 = scmp.eq.s32.totalorder %s20, 0
      %p257 = por %p255, %p256
      %p258 = scmp.ne.s32.totalorder %s247, %s250
      %p259 = scmp.eq.s32.totalorder %s25, 1
      %p260 = por %p258, %p259
      %p261 = scmp.ne.s32.totalorder %s250, %s251
      %p262 = scmp.eq.s32.totalorder %s25, 0
      %p263 = por %p261, %p262
      %p264 = scmp.ne.s32.totalorder %s250, %s251
      %p265 = scmp.eq.s32.totalorder %s26, 1
      %p266 = por %p264, %p265
      %p268 = scmp.ne.s32.totalorder %s251, %s267
      %p269 = scmp.eq.s32.totalorder %s26, 0
      %p270 = por %p268, %p269
      %s271 = ssub.s32 %s28, %s35
      %p272 = scmp.eq.s32.totalorder %s271, 0
      %s274 = sadd.s32 %s273, 1
      %s275 = scalar_select %p272, %s273, %s274
      %p278 = pneg %p272
      %p279 = scmp.eq.s32.totalorder %s20, 1
      %p280 = por %p278, %p279
      %p281 = scmp.ne.s32.totalorder %s273, %s276
      %p282 = scmp.eq.s32.totalorder %s20, 0
      %p283 = por %p281, %p282
      %p284 = scmp.ne.s32.totalorder %s273, %s276
      %p285 = scmp.eq.s32.totalorder %s25, 1
      %p286 = por %p284, %p285
      %p287 = scmp.ne.s32.totalorder %s276, %s277
      %p288 = scmp.eq.s32.totalorder %s25, 0
      %p289 = por %p287, %p288
      %p290 = scmp.ne.s32.totalorder %s276, %s277
      %p291 = scmp.eq.s32.totalorder %s26, 1
      %p292 = por %p290, %p291
      %p294 = scmp.ne.s32.totalorder %s277, %s293
      %p295 = scmp.eq.s32.totalorder %s26, 0
      %p296 = por %p294, %p295
      %s297 = ssub.s32 %s28, %s35
      %p298 = scmp.eq.s32.totalorder %s297, 0
      %s300 = sadd.s32 %s299, 1
      %s301 = scalar_select %p298, %s299, %s300
      %p304 = pneg %p298
      %p305 = scmp.eq.s32.totalorder %s20, 1
      %p306 = por %p304, %p305
      %p307 = scmp.ne.s32.totalorder %s299, %s302
      %p308 = scmp.eq.s32.totalorder %s20, 0
      %p309 = por %p307, %p308
      %p310 = scmp.ne.s32.totalorder %s299, %s302
      %p311 = scmp.eq.s32.totalorder %s25, 1
      %p312 = por %p310, %p311
      %p313 = scmp.ne.s32.totalorder %s302, %s303
      %p314 = scmp.eq.s32.totalorder %s25, 0
      %p315 = por %p313, %p314
      %p316 = scmp.ne.s32.totalorder %s302, %s303
      %p317 = scmp.eq.s32.totalorder %s26, 1
      %p318 = por %p316, %p317
      %p320 = scmp.ne.s32.totalorder %s303, %s319
      %p321 = scmp.eq.s32.totalorder %s26, 0
      %p322 = por %p320, %p321
      %s323 = ssub.s32 %s28, %s35
      %p324 = scmp.eq.s32.totalorder %s323, 0
      %s326 = sadd.s32 %s325, 1
      %s327 = scalar_select %p324, %s325, %s326
      %p330 = pneg %p324
      %p331 = scmp.eq.s32.totalorder %s20, 1
      %p332 = por %p330, %p331
      %p333 = scmp.ne.s32.totalorder %s325, %s328
      %p334 = scmp.eq.s32.totalorder %s20, 0
      %p335 = por %p333, %p334
      %p336 = scmp.ne.s32.totalorder %s325, %s328
      %p337 = scmp.eq.s32.totalorder %s25, 1
      %p338 = por %p336, %p337
      %p339 = scmp.ne.s32.totalorder %s328, %s329
      %p340 = scmp.eq.s32.totalorder %s25, 0
      %p341 = por %p339, %p340
      %p342 = scmp.ne.s32.totalorder %s328, %s329
      %p343 = scmp.eq.s32.totalorder %s26, 1
      %p344 = por %p342, %p343
      %p346 = scmp.ne.s32.totalorder %s329, %s345
      %p347 = scmp.eq.s32.totalorder %s26, 0
      %p348 = por %p346, %p347
      %s349 = ssub.s32 %s28, %s35
      %p350 = scmp.eq.s32.totalorder %s349, 0
      %s352 = sadd.s32 %s351, 1
      %s353 = scalar_select %p350, %s351, %s352
      %p356 = pneg %p350
      %p357 = scmp.eq.s32.totalorder %s20, 1
      %p358 = por %p356, %p357
      %p359 = scmp.ne.s32.totalorder %s351, %s354
      %p360 = scmp.eq.s32.totalorder %s20, 0
      %p361 = por %p359, %p360
      %p362 = scmp.ne.s32.totalorder %s351, %s354
      %p363 = scmp.eq.s32.totalorder %s25, 1
      %p364 = por %p362, %p363
      %p365 = scmp.ne.s32.totalorder %s354, %s355
      %p366 = scmp.eq.s32.totalorder %s25, 0
      %p367 = por %p365, %p366
      %p368 = scmp.ne.s32.totalorder %s354, %s355
      %p369 = scmp.eq.s32.totalorder %s26, 1
      %p370 = por %p368, %p369
      %p372 = scmp.ne.s32.totalorder %s355, %s371
      %p373 = scmp.eq.s32.totalorder %s26, 0
      %p374 = por %p372, %p373
      %s375 = ssub.s32 %s27, %s39
      %p376 = scmp.eq.s32.totalorder %s375, 0
      %s378 = sadd.s32 %s377, 1
      %s379 = scalar_select %p376, %s377, %s378
      %p382 = pneg %p376
      %p383 = scmp.eq.s32.totalorder %s20, 1
      %p384 = por %p382, %p383
      %p385 = scmp.ne.s32.totalorder %s377, %s380
      %p386 = scmp.eq.s32.totalorder %s20, 0
      %p387 = por %p385, %p386
      %p388 = scmp.ne.s32.totalorder %s377, %s380
      %p389 = scmp.eq.s32.totalorder %s25, 1
      %p390 = por %p388, %p389
      %p391 = scmp.ne.s32.totalorder %s380, %s381
      %p392 = scmp.eq.s32.totalorder %s25, 0
      %p393 = por %p391, %p392
      %p394 = scmp.ne.s32.totalorder %s380, %s381
      %p395 = scmp.eq.s32.totalorder %s26, 1
      %p396 = por %p394, %p395
      %p398 = scmp.ne.s32.totalorder %s381, %s397
      %p399 = scmp.eq.s32.totalorder %s26, 0
      %p400 = por %p398, %p399
      %p401 = scmp.le.s32.totalorder 1, %s20
      %p402 = scmp.lt.s32.totalorder %s20, 3
      %p403 = pnand %p401, %p402
      %p404 = pneg %p403
      // Predicated region
      $region9: #{tpu_custom_call.1} parent=5 // pred_check
        _
      $region10: #{tpu_custom_call.1} parent=5 // pred_check_branch
        %406 = sbr.rel (%p403) target = $region12
      $region11: #{tpu_custom_call.1} parent=5 // pred_region
        %s407 = ssub.s32 %s20, 1
        // Predicated region
        $region13: #{tpu_custom_call.1} parent=11 // pred_check
          %p408 = pneg %p58
        $region14: #{tpu_custom_call.1} parent=11 // pred_check_branch
          %410 = sbr.rel (%p408) target = $region16
        $region15: #{tpu_custom_call.1} parent=11 // pred_region
          %s411 = smul.u32 2, %s29
          %p412 = scmp.lt.s32.totalorder %s411, 1
          %s413 = scalar_select %p412, %s411, 1
          %s414 = smul.addr %s413, 8
          %s415 = scalar_lea.vmem %s0, %s414
          %s416 = smul.u32 2, %s29
        $region16: #{tpu_custom_call.1} parent=11 // pred_fallthru
          _
        // Predicated region
        $region17: #{tpu_custom_call.1} parent=11 // pred_check
          %p417 = pneg %p107
        $region18: #{tpu_custom_call.1} parent=11 // pred_check_branch
          %419 = sbr.rel (%p417) target = $region20
        $region19: #{tpu_custom_call.1} parent=11 // pred_region
          _
        $region20: #{tpu_custom_call.1} parent=11 // pred_fallthru
          _
      $region12: #{tpu_custom_call.1} parent=5 // pred_fallthru
        _
      %p420 = scmp.lt.s32.totalorder %s20, 2
      // Predicated region
      $region21: #{tpu_custom_call.1} parent=5 // pred_check
        %p421 = pneg %p420
      $region22: #{tpu_custom_call.1} parent=5 // pred_check_branch
        %423 = sbr.rel (%p421) target = $region24
      $region23: #{tpu_custom_call.1} parent=5 // pred_region
        // Predicated region
        $region25: #{tpu_custom_call.1} parent=23 // pred_check
          %p424 = pneg %p80
        $region26: #{tpu_custom_call.1} parent=23 // pred_check_branch
          %426 = sbr.rel (%p424) target = $region28
        $region27: #{tpu_custom_call.1} parent=23 // pred_region
          %s427 = smul.u32 2, %s27
          %p428 = scmp.lt.s32.totalorder %s28, 1
          %s429 = scalar_select %p428, %s28, 1
          %p430 = scmp.lt.s32.totalorder %s427, 1
          %s431 = scalar_select %p430, %s427, 1
          %s432 = smul.addr %s429, 2
          %s433 = sadd.s32 %s431, %s432
          %s434 = scalar_lea.vmem %s1, %s433
          %s435 = smul.u32 2, %s27
        $region28: #{tpu_custom_call.1} parent=23 // pred_fallthru
          _
        // Predicated region
        $region29: #{tpu_custom_call.1} parent=23 // pred_check
          %p436 = pneg %p127
        $region30: #{tpu_custom_call.1} parent=23 // pred_check_branch
          %438 = sbr.rel (%p436) target = $region32
        $region31: #{tpu_custom_call.1} parent=23 // pred_region
          %p439 = scmp.lt.s32.totalorder %s28, 1
          %s440 = scalar_select %p439, %s28, 1
          %s441 = scalar_lea.vmem %s3, %s440
        $region32: #{tpu_custom_call.1} parent=23 // pred_fallthru
          _
        // Predicated region
        $region33: #{tpu_custom_call.1} parent=23 // pred_check
          %p442 = pneg %p153
        $region34: #{tpu_custom_call.1} parent=23 // pred_check_branch
          %444 = sbr.rel (%p442) target = $region36
        $region35: #{tpu_custom_call.1} parent=23 // pred_region
          %p445 = scmp.lt.s32.totalorder %s28, 1
          %s446 = scalar_select %p445, %s28, 1
          %s447 = scalar_lea.vmem %s4, %s446
        $region36: #{tpu_custom_call.1} parent=23 // pred_fallthru
          _
        // Predicated region
        $region37: #{tpu_custom_call.1} parent=23 // pred_check
          %p448 = pneg %p179
        $region38: #{tpu_custom_call.1} parent=23 // pred_check_branch
          %450 = sbr.rel (%p448) target = $region40
        $region39: #{tpu_custom_call.1} parent=23 // pred_region
          %p451 = scmp.lt.s32.totalorder %s28, 1
          %s452 = scalar_select %p451, %s28, 1
          %s453 = scalar_lea.vmem %s5, %s452
        $region40: #{tpu_custom_call.1} parent=23 // pred_fallthru
          _
        // Predicated region
        $region41: #{tpu_custom_call.1} parent=23 // pred_check
          %p454 = pneg %p205
        $region42: #{tpu_custom_call.1} parent=23 // pred_check_branch
          %456 = sbr.rel (%p454) target = $region44
        $region43: #{tpu_custom_call.1} parent=23 // pred_region
          %p457 = scmp.lt.s32.totalorder %s28, 1
          %s458 = scalar_select %p457, %s28, 1
          %s459 = scalar_lea.vmem %s6, %s458
        $region44: #{tpu_custom_call.1} parent=23 // pred_fallthru
          _
        // Predicated region
        $region45: #{tpu_custom_call.1} parent=23 // pred_check
          %p460 = pneg %p231
        $region46: #{tpu_custom_call.1} parent=23 // pred_check_branch
          %462 = sbr.rel (%p460) target = $region48
        $region47: #{tpu_custom_call.1} parent=23 // pred_region
          %p463 = scmp.lt.s32.totalorder %s28, 1
          %s464 = scalar_select %p463, %s28, 1
          %s465 = smul.addr %s464, 4
          %s466 = smul.addr %s465, 4
          %s467 = scalar_lea.vmem %s7, %s466
        $region48: #{tpu_custom_call.1} parent=23 // pred_fallthru
          _
        // Predicated region
        $region49: #{tpu_custom_call.1} parent=23 // pred_check
          %p468 = pneg %p257
        $region50: #{tpu_custom_call.1} parent=23 // pred_check_branch
          %470 = sbr.rel (%p468) target = $region52
        $region51: #{tpu_custom_call.1} parent=23 // pred_region
          %p471 = scmp.lt.s32.totalorder %s28, 1
          %s472 = scalar_select %p471, %s28, 1
          %s473 = scalar_lea.vmem %s8, %s472
        $region52: #{tpu_custom_call.1} parent=23 // pred_fallthru
          _
        // Predicated region
        $region53: #{tpu_custom_call.1} parent=23 // pred_check
          %p474 = pneg %p283
        $region54: #{tpu_custom_call.1} parent=23 // pred_check_branch
          %476 = sbr.rel (%p474) target = $region56
        $region55: #{tpu_custom_call.1} parent=23 // pred_region
          %p477 = scmp.lt.s32.totalorder %s28, 1
          %s478 = scalar_select %p477, %s28, 1
          %s479 = smul.addr %s478, 4
          %s480 = smul.addr %s479, 4
          %s481 = scalar_lea.vmem %s9, %s480
        $region56: #{tpu_custom_call.1} parent=23 // pred_fallthru
          _
        // Predicated region
        $region57: #{tpu_custom_call.1} parent=23 // pred_check
          %p482 = pneg %p309
        $region58: #{tpu_custom_call.1} parent=23 // pred_check_branch
          %484 = sbr.rel (%p482) target = $region60
        $region59: #{tpu_custom_call.1} parent=23 // pred_region
          %p485 = scmp.lt.s32.totalorder %s28, 1
          %s486 = scalar_select %p485, %s28, 1
          %s487 = scalar_lea.vmem %s10, %s486
        $region60: #{tpu_custom_call.1} parent=23 // pred_fallthru
          _
        // Predicated region
        $region61: #{tpu_custom_call.1} parent=23 // pred_check
          %p488 = pneg %p335
        $region62: #{tpu_custom_call.1} parent=23 // pred_check_branch
          %490 = sbr.rel (%p488) target = $region64
        $region63: #{tpu_custom_call.1} parent=23 // pred_region
          %p491 = scmp.lt.s32.totalorder %s28, 1
          %s492 = scalar_select %p491, %s28, 1
          %s493 = smul.addr %s492, 16
          %s494 = smul.addr %s493, 4
          %s495 = scalar_lea.vmem %s11, %s494
        $region64: #{tpu_custom_call.1} parent=23 // pred_fallthru
          _
        // Predicated region
        $region65: #{tpu_custom_call.1} parent=23 // pred_check
          %p496 = pneg %p361
        $region66: #{tpu_custom_call.1} parent=23 // pred_check_branch
          %498 = sbr.rel (%p496) target = $region68
        $region67: #{tpu_custom_call.1} parent=23 // pred_region
          %p499 = scmp.lt.s32.totalorder %s28, 1
          %s500 = scalar_select %p499, %s28, 1
          %s501 = scalar_lea.vmem %s12, %s500
        $region68: #{tpu_custom_call.1} parent=23 // pred_fallthru
          _
      $region24: #{tpu_custom_call.1} parent=5 // pred_fallthru
        _
      %p502 = scmp.le.s32.totalorder 1, %s20
      %p503 = scmp.lt.s32.totalorder %s20, 3
      %p504 = pnand %p502, %p503
      %p505 = pneg %p504
      // Predicated region
      $region69: #{tpu_custom_call.1} parent=5 // pred_check
        _
      $region70: #{tpu_custom_call.1} parent=5 // pred_check_branch
        %507 = sbr.rel (%p504) target = $region72
      $region71: #{tpu_custom_call.1} parent=5 // pred_region
        %s508 = ssub.s32 %s20, 1
        %s509 = smul.u32 2, %s29
        %p510 = scmp.lt.s32.totalorder %s509, 1
        %s511 = scalar_select %p510, %s509, 1
        %s512 = smul.addr %s511, 8
        %s513 = scalar_lea.vmem %s0, %s512
        %p514 = pneg %p58
        %p515 = pneg %p55
        %s516 = smul.u32 2, %s29
        %p517 = scmp.lt.s32.totalorder %s30, 1
        %s518 = scalar_select %p517, %s30, 1
        %p519 = scmp.lt.s32.totalorder %s516, 1
        %s520 = scalar_select %p519, %s516, 1
        %s521 = smul.addr %s518, 2
        %s522 = sadd.s32 %s520, %s521
        %s523 = scalar_lea.vmem %s1, %s522
        %p524 = pneg %p86
        %p525 = pneg %p83
        %p526 = pneg %p107
        %p527 = pneg %p104
        %p528 = scmp.lt.s32.totalorder %s30, 1
        %s529 = scalar_select %p528, %s30, 1
        %s530 = scalar_lea.vmem %s3, %s529
        %p531 = pneg %p133
        %p532 = pneg %p130
        %p533 = scmp.lt.s32.totalorder %s30, 1
        %s534 = scalar_select %p533, %s30, 1
        %s535 = scalar_lea.vmem %s4, %s534
        %p536 = pneg %p159
        %p537 = pneg %p156
        %p538 = scmp.lt.s32.totalorder %s30, 1
        %s539 = scalar_select %p538, %s30, 1
        %s540 = scalar_lea.vmem %s5, %s539
        %p541 = pneg %p185
        %p542 = pneg %p182
        %p543 = scmp.lt.s32.totalorder %s30, 1
        %s544 = scalar_select %p543, %s30, 1
        %s545 = scalar_lea.vmem %s6, %s544
        %p546 = pneg %p211
        %p547 = pneg %p208
        %p548 = scmp.lt.s32.totalorder %s30, 1
        %s549 = scalar_select %p548, %s30, 1
        %s550 = smul.addr %s549, 4
        %s551 = smul.addr %s550, 4
        %s552 = scalar_lea.vmem %s7, %s551
        %p553 = pneg %p237
        %p554 = pneg %p234
        %p555 = scmp.lt.s32.totalorder %s30, 1
        %s556 = scalar_select %p555, %s30, 1
        %s557 = scalar_lea.vmem %s8, %s556
        %p558 = pneg %p263
        %p559 = pneg %p260
        %p560 = scmp.lt.s32.totalorder %s30, 1
        %s561 = scalar_select %p560, %s30, 1
        %s562 = smul.addr %s561, 4
        %s563 = smul.addr %s562, 4
        %s564 = scalar_lea.vmem %s9, %s563
        %p565 = pneg %p289
        %p566 = pneg %p286
        %p567 = scmp.lt.s32.totalorder %s30, 1
        %s568 = scalar_select %p567, %s30, 1
        %s569 = scalar_lea.vmem %s10, %s568
        %p570 = pneg %p315
        %p571 = pneg %p312
        %p572 = scmp.lt.s32.totalorder %s30, 1
        %s573 = scalar_select %p572, %s30, 1
        %s574 = smul.addr %s573, 16
        %s575 = smul.addr %s574, 4
        %s576 = scalar_lea.vmem %s11, %s575
        %p577 = pneg %p341
        %p578 = pneg %p338
        %p579 = scmp.lt.s32.totalorder %s30, 1
        %s580 = scalar_select %p579, %s30, 1
        %s581 = scalar_lea.vmem %s12, %s580
        %p582 = pneg %p367
        %p583 = pneg %p364
        %p584 = pneg %p393
        %p585 = pneg %p390
        %s586 = smul.u32 2, %s29
        %p587 = scmp.lt.s32.totalorder %s586, 1
        %s588 = scalar_select %p587, %s586, 1
        %s589 = smul.addr %s588, 8
        %s590 = scalar_lea.vmem %s0, %s589
        %s591 = smul.u32 2, %s29
        %s592 = smul.u32 2, %s29
        %p593 = scmp.lt.s32.totalorder %s30, 1
        %s594 = scalar_select %p593, %s30, 1
        %p595 = scmp.lt.s32.totalorder %s592, 1
        %s596 = scalar_select %p595, %s592, 1
        %s597 = smul.addr %s594, 2
        %s598 = sadd.s32 %s596, %s597
        %s599 = scalar_lea.vmem %s1, %s598
        %s600 = smul.u32 2, %s29
        %p601 = scmp.lt.s32.totalorder %s30, 1
        %s602 = scalar_select %p601, %s30, 1
        %s603 = scalar_lea.vmem %s3, %s602
        %p604 = scmp.lt.s32.totalorder %s30, 1
        %s605 = scalar_select %p604, %s30, 1
        %s606 = scalar_lea.vmem %s4, %s605
        %p607 = scmp.lt.s32.totalorder %s30, 1
        %s608 = scalar_select %p607, %s30, 1
        %s609 = scalar_lea.vmem %s5, %s608
        %p610 = scmp.lt.s32.totalorder %s30, 1
        %s611 = scalar_select %p610, %s30, 1
        %s612 = scalar_lea.vmem %s6, %s611
        %p613 = scmp.lt.s32.totalorder %s30, 1
        %s614 = scalar_select %p613, %s30, 1
        %s615 = smul.addr %s614, 4
        %s616 = smul.addr %s615, 4
        %s617 = scalar_lea.vmem %s7, %s616
        %p618 = scmp.lt.s32.totalorder %s30, 1
        %s619 = scalar_select %p618, %s30, 1
        %s620 = scalar_lea.vmem %s8, %s619
        %p621 = scmp.lt.s32.totalorder %s30, 1
        %s622 = scalar_select %p621, %s30, 1
        %s623 = smul.addr %s622, 4
        %s624 = smul.addr %s623, 4
        %s625 = scalar_lea.vmem %s9, %s624
        %p626 = scmp.lt.s32.totalorder %s30, 1
        %s627 = scalar_select %p626, %s30, 1
        %s628 = scalar_lea.vmem %s10, %s627
        %p629 = scmp.lt.s32.totalorder %s30, 1
        %s630 = scalar_select %p629, %s30, 1
        %s631 = smul.addr %s630, 16
        %s632 = smul.addr %s631, 4
        %s633 = scalar_lea.vmem %s11, %s632
        %p634 = scmp.lt.s32.totalorder %s30, 1
        %s635 = scalar_select %p634, %s30, 1
        %s636 = scalar_lea.vmem %s12, %s635
        %s637 = smul.u32 2, %s29
        %p639 = scmp.eq.s32.totalorder %s30, 0
        // Predicated region
        $region73: #{tpu_custom_call.1} parent=71 // pred_check
          %p640 = pneg %p639
        $region74: #{tpu_custom_call.1} parent=71 // pred_check_branch
          %642 = sbr.rel (%p640) target = $region76
        $region75: #{tpu_custom_call.1} parent=71 // pred_region
          %v643 = vld [vmem:[%s590] sm:$0xff]
          %v644 = vld [vmem:[%s590 + $0x8] sm:$0xff]
          %vm645 = vcmask 261120
          %646 = vst.msk [vmem:[#allocation2] sm:$0xff] %vm645, %v643
          %647 = vst.msk [vmem:[#allocation2 + $0x8] sm:$0xff] %vm645, %v644
        $region76: #{tpu_custom_call.1} parent=71 // pred_fallthru
          _
        %v648 = vld [vmem:[%s2] sm:$0xff]
        %v649 = vld [vmem:[%s603] sm:$0x1]
        %v650 = vld [vmem:[%s606] sm:$0x1]
        %v651 = vld [vmem:[%s609] sm:$0x1]
        %v652 = vld [vmem:[%s612] sm:$0x1]
        %v653 = vld [vmem:[%s617] sm:$0xf]
        %v654 = vld [vmem:[%s617 + $0x4] sm:$0xf]
        %v655 = vld [vmem:[%s617 + $0x8] sm:$0xf]
        %v656 = vld [vmem:[%s617 + $0xc] sm:$0xf]
        %v657 = vld [vmem:[%s620] sm:$0x1]
        %v658 = vld [vmem:[%s636] sm:$0x1]
        %v659 = vld [vmem:[#allocation2] sm:$0xff]
        %v660 = vld [vmem:[%s599] sm:$0x1]
        %vm661 = vcmask 261120
        %v662 = vsel %vm661, %v659, 0.0
        %663 = vadd.xlane.f32.xlu0 %v662
        %v664 = vpop.xlane.xlu0 %663
        %v665 = vrcp.pop 32.0
        %v666 = vmul.f32 32.0, %v665
        %v667 = vsub.f32 1.0, %v666
        %v668 = vmul.f32 %v665, %v667
        %v669 = vadd.f32 %v665, %v668
        %vm670 = vweird.f32 %v665
        %v671 = vsel %vm670, %v665, %v669
        %v672 = vmul.f32 %v664, %v671
        %v673 = vsub.f32 %v659, %v672
        %v674 = vmul.f32 %v673, %v673
        %v675 = vsel %vm661, %v674, 0.0
        %676 = vadd.xlane.f32.xlu0 %v675
        %v677 = vpop.xlane.xlu0 %676
        %v678 = vmul.f32 %v677, %v671
        %v679 = vadd.f32 %v678, 1e-05
        %v680 = vrsqrt.pop %v679
        %v681 = vmul.f32 %v680, %v679
        %v682 = vmul.f32 %v681, %v680
        %v683 = vmul.f32 0.5, %v682
        %v684 = vsub.f32 1.5, %v683
        %v685 = vmul.f32 %v680, %v684
        %vm686 = vweird.f32 %v679
        %vm687 = vweird.f32 %v680
        %vm688 = vmor %vm686, %vm687
        %v689 = vsel %vm688, %v680, %v685
        %v690 = vmul.f32 %v673, %v689
        %v692 = vperm.slane %v649, 0
        %v694 = vmul.f32 %v690, %v692
        %v696 = vperm.slane %v650, 0
        %v698 = vadd.f32 %v694, %v696
        %v699 = vadd.f32 %v660, 1.0
        %v701 = vperm.slane %v699, 0
        %702 = vrot.lane.b32.xlu0 %v701, 96
        %v703 = vpop.permute.xlu0 %702
        %v705 = vmul.f32 %v698, %v703
        %v707 = vperm.slane %v660, 0
        %v709 = vadd.f32 %v705, %v707
        %v710 = vpack.c.bf16 %v709, %v709
        %v712 = vperm.slane %v657, 0
        %v718 = vunpack.c.l.b16 %v653
        %v719 = vunpack.c.l.b16 %v654
        %v720 = vunpack.c.l.b16 %v655
        %v721 = vunpack.c.l.b16 %v656
        %v722 = vpack.c.b16 %v719, %v718
        %v723 = vpack.c.b16 %v721, %v720
        %v727 = vsel %vm661, %v710, 0
        %729 = vmatpush.bf16.msra.mxu0 0
        %730 = vmatpush.bf16.msra.mxu0 0
        %731 = vmatpush.bf16.msra.mxu0 0
        %732 = vmatpush.bf16.msra.mxu0 0
        %733 = vmatpush.bf16.msra.mxu0 0
        %734 = vmatpush.bf16.msra.mxu0 0
        %735 = vmatpush.bf16.msra.mxu0 %v723
        %736 = vmatpush.bf16.msra.mxu0 %v722
        %737 = vmatmul.bf16.gmra.mxu0 %v727
        %v738 = vpop.f32.mrf.mxu0
        %v739 = vadd.f32 %v712, %v738
        %v740 = vpop.f32.mrf.mxu0
        %741 = vdwg.mxu0
        %v742 = vmul.f32 %v739, 0.35355338
        %v743 = vpack.c.bf16 %v742, %v742
        %v744 = vpack.c.bf16 %v739, %v739
        %v746 = vunpack.c.l.b16 %v743
        %v747 = vpack.c.b16 %v746, %v746
        %748 = vrot.lane.b32.xlu0 %v747, 96
        %v749 = vpop.permute.xlu0 %748
        %vm750 = vcmask 64512
        %v752 = vsel %vm750, %v749, 0
        %v755 = vsel %vm750, %v744, 0
        %757 = vmatpush.bf16.xpose.msra.mxu0 0
        %758 = vmatpush.bf16.xpose.msra.mxu0 0
        %759 = vmatpush.bf16.xpose.msra.mxu0 0
        %760 = vmatpush.bf16.xpose.msra.mxu0 0
        %761 = vmatpush.bf16.xpose.msra.mxu0 0
        %762 = vmatpush.bf16.xpose.msra.mxu0 0
        %763 = vmatpush.bf16.xpose.msra.mxu0 0
        %764 = vmatpush.bf16.xpose.msra.mxu0 %v755
        %765 = vmatmul.bf16.gmra.mxu0 %v752
        %v766 = vpop.f32.mrf.mxu0
        %v767 = vadd.f32 %v648, %v766
        %v768 = vpop.f32.mrf.mxu0
        %769 = vdwg.mxu0
        %v770 = vsel %vm750, %v767, -inf
        %771 = vmax.xlane.f32.xlu0 %v770
        %v772 = vpop.xlane.xlu0 %771
        %v773 = vsub.f32 %v767, %v772
        %v774 = vmul.f32 %v773, 1.442695
        %v775 = vpow.pop %v774
        %v776 = vsel %vm750, %v775, 0.0
        %777 = vadd.xlane.f32.xlu0 %v776
        %v778 = vpop.xlane.xlu0 %777
        %v779 = vpack.c.bf16 %v775, %v775
        %v781 = vunpack.c.l.b16 %v744
        %v782 = vpack.c.b16 %v781, %v781
        %783 = vrot.lane.b32.xlu0 %v782, 64
        %v784 = vpop.permute.xlu0 %783
        %v786 = vsel %vm750, %v779, 0
        %vm788 = vcmask 1043456
        %v790 = vsel %vm788, %v784, 0
        %792 = vmatpush.bf16.msra.mxu0 0
        %793 = vmatpush.bf16.msra.mxu0 0
        %794 = vmatpush.bf16.msra.mxu0 0
        %795 = vmatpush.bf16.msra.mxu0 0
        %796 = vmatpush.bf16.msra.mxu0 0
        %797 = vmatpush.bf16.msra.mxu0 0
        %798 = vmatpush.bf16.msra.mxu0 0
        %799 = vmatpush.bf16.msra.mxu0 %v790
        %800 = vmatmul.bf16.gmra.mxu0 %v786
        %v801 = vpop.f32.mrf.mxu0
        %v802 = vadd.f32 0.0, %v801
        %v803 = vpop.f32.mrf.mxu0
        %804 = vdwg.mxu0
        %v805 = vrcp.pop %v778
        %v806 = vmul.f32 %v802, %v805
        %807 = vrot.lane.b32.xlu0 %v747, 88
        %v808 = vpop.permute.xlu0 %807
        %809 = vrot.lane.b32.xlu0 %v782, 120
        %v810 = vpop.permute.xlu0 %809
        %v812 = vsel %vm750, %v808, 0
        %v815 = vsel %vm750, %v810, 0
        %817 = vmatpush.bf16.xpose.msra.mxu0 0
        %818 = vmatpush.bf16.xpose.msra.mxu0 0
        %819 = vmatpush.bf16.xpose.msra.mxu0 0
        %820 = vmatpush.bf16.xpose.msra.mxu0 0
        %821 = vmatpush.bf16.xpose.msra.mxu0 0
        %822 = vmatpush.bf16.xpose.msra.mxu0 0
        %823 = vmatpush.bf16.xpose.msra.mxu0 0
        %824 = vmatpush.bf16.xpose.msra.mxu0 %v815
        %825 = vmatmul.bf16.gmra.mxu0 %v812
        %v826 = vpop.f32.mrf.mxu0
        %v827 = vadd.f32 %v648, %v826
        %v828 = vpop.f32.mrf.mxu0
        %829 = vdwg.mxu0
        %v830 = vsel %vm750, %v827, -inf
        %831 = vmax.xlane.f32.xlu0 %v830
        %v832 = vpop.xlane.xlu0 %831
        %v833 = vsub.f32 %v827, %v832
        %v834 = vmul.f32 %v833, 1.442695
        %v835 = vpow.pop %v834
        %v836 = vsel %vm750, %v835, 0.0
        %837 = vadd.xlane.f32.xlu0 %v836
        %v838 = vpop.xlane.xlu0 %837
        %v839 = vpack.c.bf16 %v835, %v835
        %840 = vrot.lane.b32.xlu0 %v782, 56
        %v841 = vpop.permute.xlu0 %840
        %v843 = vsel %vm750, %v839, 0
        %v846 = vsel %vm788, %v841, 0
        %848 = vmatpush.bf16.msra.mxu0 0
        %849 = vmatpush.bf16.msra.mxu0 0
        %850 = vmatpush.bf16.msra.mxu0 0
        %851 = vmatpush.bf16.msra.mxu0 0
        %852 = vmatpush.bf16.msra.mxu0 0
        %853 = vmatpush.bf16.msra.mxu0 0
        %854 = vmatpush.bf16.msra.mxu0 0
        %855 = vmatpush.bf16.msra.mxu0 %v846
        %856 = vmatmul.bf16.gmra.mxu0 %v843
        %v857 = vpop.f32.mrf.mxu0
        %v858 = vadd.f32 0.0, %v857
        %v859 = vpop.f32.mrf.mxu0
        %860 = vdwg.mxu0
        %v861 = vrcp.pop %v838
        %v862 = vmul.f32 %v858, %v861
        %863 = vrot.lane.b32.xlu0 %v747, 80
        %v864 = vpop.permute.xlu0 %863
        %865 = vrot.lane.b32.xlu0 %v782, 112
        %v866 = vpop.permute.xlu0 %865
        %v868 = vsel %vm750, %v864, 0
        %v871 = vsel %vm750, %v866, 0
        %873 = vmatpush.bf16.xpose.msra.mxu0 0
        %874 = vmatpush.bf16.xpose.msra.mxu0 0
        %875 = vmatpush.bf16.xpose.msra.mxu0 0
        %876 = vmatpush.bf16.xpose.msra.mxu0 0
        %877 = vmatpush.bf16.xpose.msra.mxu0 0
        %878 = vmatpush.bf16.xpose.msra.mxu0 0
        %879 = vmatpush.bf16.xpose.msra.mxu0 0
        %880 = vmatpush.bf16.xpose.msra.mxu0 %v871
        %881 = vmatmul.bf16.gmra.mxu0 %v868
        %v882 = vpop.f32.mrf.mxu0
        %v883 = vadd.f32 %v648, %v882
        %v884 = vpop.f32.mrf.mxu0
        %885 = vdwg.mxu0
        %v886 = vsel %vm750, %v883, -inf
        %887 = vmax.xlane.f32.xlu0 %v886
        %v888 = vpop.xlane.xlu0 %887
        %v889 = vsub.f32 %v883, %v888
        %v890 = vmul.f32 %v889, 1.442695
        %v891 = vpow.pop %v890
        %v892 = vsel %vm750, %v891, 0.0
        %893 = vadd.xlane.f32.xlu0 %v892
        %v894 = vpop.xlane.xlu0 %893
        %v895 = vpack.c.bf16 %v891, %v891
        %896 = vrot.lane.b32.xlu0 %v782, 48
        %v897 = vpop.permute.xlu0 %896
        %v899 = vsel %vm750, %v895, 0
        %v902 = vsel %vm788, %v897, 0
        %904 = vmatpush.bf16.msra.mxu0 0
        %905 = vmatpush.bf16.msra.mxu0 0
        %906 = vmatpush.bf16.msra.mxu0 0
        %907 = vmatpush.bf16.msra.mxu0 0
        %908 = vmatpush.bf16.msra.mxu0 0
        %909 = vmatpush.bf16.msra.mxu0 0
        %910 = vmatpush.bf16.msra.mxu0 0
        %911 = vmatpush.bf16.msra.mxu0 %v902
        %912 = vmatmul.bf16.gmra.mxu0 %v899
        %v913 = vpop.f32.mrf.mxu0
        %v914 = vadd.f32 0.0, %v913
        %v915 = vpop.f32.mrf.mxu0
        %916 = vdwg.mxu0
        %v917 = vrcp.pop %v894
        %v918 = vmul.f32 %v914, %v917
        %919 = vrot.lane.b32.xlu0 %v747, 72
        %v920 = vpop.permute.xlu0 %919
        %921 = vrot.lane.b32.xlu0 %v782, 104
        %v922 = vpop.permute.xlu0 %921
        %v924 = vsel %vm750, %v920, 0
        %v927 = vsel %vm750, %v922, 0
        %929 = vmatpush.bf16.xpose.msra.mxu0 0
        %930 = vmatpush.bf16.xpose.msra.mxu0 0
        %931 = vmatpush.bf16.xpose.msra.mxu0 0
        %932 = vmatpush.bf16.xpose.msra.mxu0 0
        %933 = vmatpush.bf16.xpose.msra.mxu0 0
        %934 = vmatpush.bf16.xpose.msra.mxu0 0
        %935 = vmatpush.bf16.xpose.msra.mxu0 0
        %936 = vmatpush.bf16.xpose.msra.mxu0 %v927
        %937 = vmatmul.bf16.gmra.mxu0 %v924
        %v938 = vpop.f32.mrf.mxu0
        %v939 = vadd.f32 %v648, %v938
        %v940 = vpop.f32.mrf.mxu0
        %941 = vdwg.mxu0
        %v942 = vsel %vm750, %v939, -inf
        %943 = vmax.xlane.f32.xlu0 %v942
        %v944 = vpop.xlane.xlu0 %943
        %v945 = vsub.f32 %v939, %v944
        %v946 = vmul.f32 %v945, 1.442695
        %v947 = vpow.pop %v946
        %v948 = vsel %vm750, %v947, 0.0
        %949 = vadd.xlane.f32.xlu0 %v948
        %v950 = vpop.xlane.xlu0 %949
        %v951 = vpack.c.bf16 %v947, %v947
        %952 = vrot.lane.b32.xlu0 %v782, 40
        %v953 = vpop.permute.xlu0 %952
        %v955 = vsel %vm750, %v951, 0
        %v958 = vsel %vm788, %v953, 0
        %960 = vmatpush.bf16.msra.mxu0 0
        %961 = vmatpush.bf16.msra.mxu0 0
        %962 = vmatpush.bf16.msra.mxu0 0
        %963 = vmatpush.bf16.msra.mxu0 0
        %964 = vmatpush.bf16.msra.mxu0 0
        %965 = vmatpush.bf16.msra.mxu0 0
        %966 = vmatpush.bf16.msra.mxu0 0
        %967 = vmatpush.bf16.msra.mxu0 %v958
        %968 = vmatmul.bf16.gmra.mxu0 %v955
        %v969 = vpop.f32.mrf.mxu0
        %v970 = vadd.f32 0.0, %v969
        %v971 = vpop.f32.mrf.mxu0
        %972 = vdwg.mxu0
        %v973 = vrcp.pop %v950
        %v974 = vmul.f32 %v970, %v973
        %976 = vrot.lane.b32.xlu0 %v862, 8
        %v977 = vpop.permute.xlu0 %976
        %980 = vrot.lane.b32.xlu0 %v918, 16
        %v981 = vpop.permute.xlu0 %980
        %984 = vrot.lane.b32.xlu0 %v974, 24
        %v985 = vpop.permute.xlu0 %984
        %v987 = vsel %vm750, %v806, %v977
        %vm988 = vcmask 130048
        %v989 = vsel %vm988, %v987, %v981
        %vm990 = vcmask 195584
        %v991 = vsel %vm990, %v989, %v985
        %v992 = vadd.f32 %v659, %v991
        %v993 = vsel %vm661, %v992, 0.0
        %994 = vadd.xlane.f32.xlu0 %v993
        %v995 = vpop.xlane.xlu0 %994
        %v996 = vmul.f32 %v995, %v671
        %v997 = vsub.f32 %v992, %v996
        %v998 = vmul.f32 %v997, %v997
        %v999 = vsel %vm661, %v998, 0.0
        %1000 = vadd.xlane.f32.xlu0 %v999
        %v1001 = vpop.xlane.xlu0 %1000
        %v1002 = vmul.f32 %v1001, %v671
        %v1003 = vadd.f32 %v1002, 1e-05
        %v1004 = vrsqrt.pop %v1003
        %v1005 = vmul.f32 %v1004, %v1003
        %v1006 = vmul.f32 %v1005, %v1004
        %v1007 = vmul.f32 0.5, %v1006
        %v1008 = vsub.f32 1.5, %v1007
        %v1009 = vmul.f32 %v1004, %v1008
        %vm1010 = vweird.f32 %v1003
        %vm1011 = vweird.f32 %v1004
        %vm1012 = vmor %vm1010, %vm1011
        %v1013 = vsel %vm1012, %v1004, %v1009
        %v1014 = vmul.f32 %v997, %v1013
        %v1016 = vperm.slane %v651, 0
        %v1018 = vmul.f32 %v1014, %v1016
        %v1020 = vperm.slane %v652, 0
        %v1022 = vadd.f32 %v1018, %v1020
        %1023 = vrot.lane.b32.xlu0 %v701, 32
        %v1024 = vpop.permute.xlu0 %1023
        %v1026 = vmul.f32 %v1022, %v1024
        %1027 = vrot.lane.b32.xlu0 %v707, 64
        %v1028 = vpop.permute.xlu0 %1027
        %v1030 = vadd.f32 %v1026, %v1028
        %v1031 = vpack.c.bf16 %v1030, %v1030
        %v1032 = vld [vmem:[%s625] sm:$0xf]
        %v1033 = vld [vmem:[%s625 + $0x4] sm:$0xf]
        %v1034 = vld [vmem:[%s625 + $0x8] sm:$0xf]
        %v1035 = vld [vmem:[%s625 + $0xc] sm:$0xf]
        %v1036 = vld [vmem:[%s628] sm:$0x1]
        %v1037 = vld [vmem:[%s633] sm:$0xf]
        %v1038 = vld [vmem:[%s633 + $0x4] sm:$0xf]
        %v1039 = vld [vmem:[%s633 + $0x8] sm:$0xf]
        %v1040 = vld [vmem:[%s633 + $0xc] sm:$0xf]
        %v1041 = vld [vmem:[%s633 + $0x10] sm:$0xf]
        %v1042 = vld [vmem:[%s633 + $0x14] sm:$0xf]
        %v1043 = vld [vmem:[%s633 + $0x18] sm:$0xf]
        %v1044 = vld [vmem:[%s633 + $0x1c] sm:$0xf]
        %v1045 = vld [vmem:[%s633 + $0x20] sm:$0xf]
        %v1046 = vld [vmem:[%s633 + $0x24] sm:$0xf]
        %v1047 = vld [vmem:[%s633 + $0x28] sm:$0xf]
        %v1048 = vld [vmem:[%s633 + $0x2c] sm:$0xf]
        %v1049 = vld [vmem:[%s633 + $0x30] sm:$0xf]
        %v1050 = vld [vmem:[%s633 + $0x34] sm:$0xf]
        %v1051 = vld [vmem:[%s633 + $0x38] sm:$0xf]
        %v1052 = vld [vmem:[%s633 + $0x3c] sm:$0xf]
        %v1054 = vperm.slane %v1036, 0
        %v1060 = vunpack.c.l.b16 %v1032
        %v1061 = vunpack.c.l.b16 %v1033
        %v1062 = vunpack.c.l.b16 %v1034
        %v1063 = vunpack.c.l.b16 %v1035
        %v1064 = vpack.c.b16 %v1061, %v1060
        %v1065 = vpack.c.b16 %v1063, %v1062
        %v1069 = vsel %vm661, %v1031, 0
        %1071 = vmatpush.bf16.msra.mxu0 0
        %1072 = vmatpush.bf16.msra.mxu0 0
        %1073 = vmatpush.bf16.msra.mxu0 0
        %1074 = vmatpush.bf16.msra.mxu0 0
        %1075 = vmatpush.bf16.msra.mxu0 0
        %1076 = vmatpush.bf16.msra.mxu0 0
        %1077 = vmatpush.bf16.msra.mxu0 %v1065
        %1078 = vmatpush.bf16.msra.mxu0 %v1064
        %1079 = vmatmul.bf16.gmra.mxu0 %v1069
        %v1080 = vpop.f32.mrf.mxu0
        %v1081 = vadd.f32 %v1054, %v1080
        %v1082 = vpop.f32.mrf.mxu0
        %1083 = vdwg.mxu0
        %v1084 = vmul.f32 %v1081, 0.5
        %v1085 = vmul.f32 %v1081, 0.70710677
        %vm1086 = vcmp.ge.f32.partialorder %v1085, 0.0
        %v1087 = vsel %vm1086, 1.0, -1.0
        %v1088 = vand.u32 2147483647, %v1085
        %v1089 = vmul.f32 %v1088, 0.3275911
        %v1090 = vadd.f32 %v1089, 1.0
        %v1091 = vrcp.pop %v1090
        %v1092 = vmul.f32 %v1091, 1.0614054
        %v1093 = vadd.f32 %v1092, -1.4531521
        %v1094 = vmul.f32 %v1093, %v1091
        %v1095 = vadd.f32 %v1094, 1.4214138
        %v1096 = vmul.f32 %v1095, %v1091
        %v1097 = vadd.f32 %v1096, -0.28449672
        %v1098 = vmul.f32 %v1097, %v1091
        %v1099 = vadd.f32 %v1098, 0.2548296
        %v1100 = vmul.f32 %v1099, %v1091
        %v1101 = vsub.f32 0.0, %v1088
        %v1102 = vmul.f32 %v1101, %v1088
        %v1103 = vmul.f32 %v1102, 1.442695
        %v1104 = vpow.pop %v1103
        %v1105 = vmul.f32 %v1100, %v1104
        %v1106 = vsub.f32 1.0, %v1105
        %v1107 = vmul.f32 %v1087, %v1106
        %v1108 = vadd.f32 %v1107, 1.0
        %v1109 = vmul.f32 %v1084, %v1108
        %v1110 = vpack.c.bf16 %v1109, %v1109
        %v1112 = vperm.slane %v658, 0
        %v1130 = vunpack.c.l.b16 %v1037
        %v1131 = vunpack.c.l.b16 %v1038
        %v1132 = vunpack.c.l.b16 %v1039
        %v1133 = vunpack.c.l.b16 %v1040
        %v1134 = vunpack.c.l.b16 %v1041
        %v1135 = vunpack.c.l.b16 %v1042
        %v1136 = vunpack.c.l.b16 %v1043
        %v1137 = vunpack.c.l.b16 %v1044
        %v1138 = vunpack.c.l.b16 %v1045
        %v1139 = vunpack.c.l.b16 %v1046
        %v1140 = vunpack.c.l.b16 %v1047
        %v1141 = vunpack.c.l.b16 %v1048
        %v1142 = vunpack.c.l.b16 %v1049
        %v1143 = vunpack.c.l.b16 %v1050
        %v1144 = vunpack.c.l.b16 %v1051
        %v1145 = vunpack.c.l.b16 %v1052
        %v1146 = vpack.c.b16 %v1131, %v1130
        %v1147 = vpack.c.b16 %v1133, %v1132
        %v1148 = vpack.c.b16 %v1135, %v1134
        %v1149 = vpack.c.b16 %v1137, %v1136
        %v1150 = vpack.c.b16 %v1139, %v1138
        %v1151 = vpack.c.b16 %v1141, %v1140
        %v1152 = vpack.c.b16 %v1143, %v1142
        %v1153 = vpack.c.b16 %v1145, %v1144
        %1162 = vmatpush.bf16.msra.mxu0 %v1153
        %1163 = vmatpush.bf16.msra.mxu0 %v1152
        %1164 = vmatpush.bf16.msra.mxu0 %v1151
        %1165 = vmatpush.bf16.msra.mxu0 %v1150
        %1166 = vmatpush.bf16.msra.mxu0 %v1149
        %1167 = vmatpush.bf16.msra.mxu0 %v1148
        %1168 = vmatpush.bf16.msra.mxu0 %v1147
        %1169 = vmatpush.bf16.msra.mxu0 %v1146
        %1170 = vmatmul.bf16.gmra.mxu0 %v1110
        %v1171 = vpop.f32.mrf.mxu0
        %v1172 = vadd.f32 %v1112, %v1171
        %v1173 = vpop.f32.mrf.mxu0
        %1174 = vdwg.mxu0
        %v1175 = vmul.f32 %v1172, 0.5
        %v1176 = vmul.f32 %v1172, 0.70710677
        %vm1177 = vcmp.ge.f32.partialorder %v1176, 0.0
        %v1178 = vsel %vm1177, 1.0, -1.0
        %v1179 = vand.u32 2147483647, %v1176
        %v1180 = vmul.f32 %v1179, 0.3275911
        %v1181 = vadd.f32 %v1180, 1.0
        %v1182 = vrcp.pop %v1181
        %v1183 = vmul.f32 %v1182, 1.0614054
        %v1184 = vadd.f32 %v1183, -1.4531521
        %v1185 = vmul.f32 %v1184, %v1182
        %v1186 = vadd.f32 %v1185, 1.4214138
        %v1187 = vmul.f32 %v1186, %v1182
        %v1188 = vadd.f32 %v1187, -0.28449672
        %v1189 = vmul.f32 %v1188, %v1182
        %v1190 = vadd.f32 %v1189, 0.2548296
        %v1191 = vmul.f32 %v1190, %v1182
        %v1192 = vsub.f32 0.0, %v1179
        %v1193 = vmul.f32 %v1192, %v1179
        %v1194 = vmul.f32 %v1193, 1.442695
        %v1195 = vpow.pop %v1194
        %v1196 = vmul.f32 %v1191, %v1195
        %v1197 = vsub.f32 1.0, %v1196
        %v1198 = vmul.f32 %v1178, %v1197
        %v1199 = vadd.f32 %v1198, 1.0
        %v1200 = vmul.f32 %v1175, %v1199
        %v1201 = vadd.f32 %v992, %v1200
        %1202 = vst.msk [vmem:[#allocation2] sm:$0xff] %vm661, %v1201
        %s1203 = scalar_lea.vmem [#allocation2], 8
        %v1204 = vld [vmem:[%s1203] sm:$0xff]
        %s1205 = scalar_lea.vmem %s599, 1
        %v1206 = vld [vmem:[%s1205] sm:$0x1]
        %v1207 = vsel %vm661, %v1204, 0.0
        %1208 = vadd.xlane.f32.xlu0 %v1207
        %v1209 = vpop.xlane.xlu0 %1208
        %v1210 = vmul.f32 %v1209, %v671
        %v1211 = vsub.f32 %v1204, %v1210
        %v1212 = vmul.f32 %v1211, %v1211
        %v1213 = vsel %vm661, %v1212, 0.0
        %1214 = vadd.xlane.f32.xlu0 %v1213
        %v1215 = vpop.xlane.xlu0 %1214
        %v1216 = vmul.f32 %v1215, %v671
        %v1217 = vadd.f32 %v1216, 1e-05
        %v1218 = vrsqrt.pop %v1217
        %v1219 = vmul.f32 %v1218, %v1217
        %v1220 = vmul.f32 %v1219, %v1218
        %v1221 = vmul.f32 0.5, %v1220
        %v1222 = vsub.f32 1.5, %v1221
        %v1223 = vmul.f32 %v1218, %v1222
        %vm1224 = vweird.f32 %v1217
        %vm1225 = vweird.f32 %v1218
        %vm1226 = vmor %vm1224, %vm1225
        %v1227 = vsel %vm1226, %v1218, %v1223
        %v1228 = vmul.f32 %v1211, %v1227
        %v1229 = vmul.f32 %v1228, %v692
        %v1230 = vadd.f32 %v1229, %v696
        %v1231 = vadd.f32 %v1206, 1.0
        %v1233 = vperm.slane %v1231, 0
        %1234 = vrot.lane.b32.xlu0 %v1233, 96
        %v1235 = vpop.permute.xlu0 %1234
        %v1237 = vmul.f32 %v1230, %v1235
        %v1239 = vperm.slane %v1206, 0
        %v1241 = vadd.f32 %v1237, %v1239
        %v1242 = vpack.c.bf16 %v1241, %v1241
        %v1244 = vsel %vm661, %v1242, 0
        %1246 = vmatpush.bf16.msra.mxu0 0
        %1247 = vmatpush.bf16.msra.mxu0 0
        %1248 = vmatpush.bf16.msra.mxu0 0
        %1249 = vmatpush.bf16.msra.mxu0 0
        %1250 = vmatpush.bf16.msra.mxu0 0
        %1251 = vmatpush.bf16.msra.mxu0 0
        %1252 = vmatpush.bf16.msra.mxu0 %v723
        %1253 = vmatpush.bf16.msra.mxu0 %v722
        %1254 = vmatmul.bf16.gmra.mxu0 %v1244
        %v1255 = vpop.f32.mrf.mxu0
        %v1256 = vadd.f32 %v712, %v1255
        %v1257 = vpop.f32.mrf.mxu0
        %1258 = vdwg.mxu0
        %v1259 = vmul.f32 %v1256, 0.35355338
        %v1260 = vpack.c.bf16 %v1259, %v1259
        %v1261 = vpack.c.bf16 %v1256, %v1256
        %v1263 = vunpack.c.l.b16 %v1260
        %v1264 = vpack.c.b16 %v1263, %v1263
        %1265 = vrot.lane.b32.xlu0 %v1264, 96
        %v1266 = vpop.permute.xlu0 %1265
        %v1268 = vsel %vm750, %v1266, 0
        %v1271 = vsel %vm750, %v1261, 0
        %1273 = vmatpush.bf16.xpose.msra.mxu0 0
        %1274 = vmatpush.bf16.xpose.msra.mxu0 0
        %1275 = vmatpush.bf16.xpose.msra.mxu0 0
        %1276 = vmatpush.bf16.xpose.msra.mxu0 0
        %1277 = vmatpush.bf16.xpose.msra.mxu0 0
        %1278 = vmatpush.bf16.xpose.msra.mxu0 0
        %1279 = vmatpush.bf16.xpose.msra.mxu0 0
        %1280 = vmatpush.bf16.xpose.msra.mxu0 %v1271
        %1281 = vmatmul.bf16.gmra.mxu0 %v1268
        %v1282 = vpop.f32.mrf.mxu0
        %v1283 = vadd.f32 %v648, %v1282
        %v1284 = vpop.f32.mrf.mxu0
        %1285 = vdwg.mxu0
        %v1286 = vsel %vm750, %v1283, -inf
        %1287 = vmax.xlane.f32.xlu0 %v1286
        %v1288 = vpop.xlane.xlu0 %1287
        %v1289 = vsub.f32 %v1283, %v1288
        %v1290 = vmul.f32 %v1289, 1.442695
        %v1291 = vpow.pop %v1290
        %v1292 = vsel %vm750, %v1291, 0.0
        %1293 = vadd.xlane.f32.xlu0 %v1292
        %v1294 = vpop.xlane.xlu0 %1293
        %v1295 = vpack.c.bf16 %v1291, %v1291
        %v1297 = vunpack.c.l.b16 %v1261
        %v1298 = vpack.c.b16 %v1297, %v1297
        %1299 = vrot.lane.b32.xlu0 %v1298, 64
        %v1300 = vpop.permute.xlu0 %1299
        %v1302 = vsel %vm750, %v1295, 0
        %v1305 = vsel %vm788, %v1300, 0
        %1307 = vmatpush.bf16.msra.mxu0 0
        %1308 = vmatpush.bf16.msra.mxu0 0
        %1309 = vmatpush.bf16.msra.mxu0 0
        %1310 = vmatpush.bf16.msra.mxu0 0
        %1311 = vmatpush.bf16.msra.mxu0 0
        %1312 = vmatpush.bf16.msra.mxu0 0
        %1313 = vmatpush.bf16.msra.mxu0 0
        %1314 = vmatpush.bf16.msra.mxu0 %v1305
        %1315 = vmatmul.bf16.gmra.mxu0 %v1302
        %v1316 = vpop.f32.mrf.mxu0
        %v1317 = vadd.f32 0.0, %v1316
        %v1318 = vpop.f32.mrf.mxu0
        %1319 = vdwg.mxu0
        %v1320 = vrcp.pop %v1294
        %v1321 = vmul.f32 %v1317, %v1320
        %1322 = vrot.lane.b32.xlu0 %v1264, 88
        %v1323 = vpop.permute.xlu0 %1322
        %1324 = vrot.lane.b32.xlu0 %v1298, 120
        %v1325 = vpop.permute.xlu0 %1324
        %v1327 = vsel %vm750, %v1323, 0
        %v1330 = vsel %vm750, %v1325, 0
        %1332 = vmatpush.bf16.xpose.msra.mxu0 0
        %1333 = vmatpush.bf16.xpose.msra.mxu0 0
        %1334 = vmatpush.bf16.xpose.msra.mxu0 0
        %1335 = vmatpush.bf16.xpose.msra.mxu0 0
        %1336 = vmatpush.bf16.xpose.msra.mxu0 0
        %1337 = vmatpush.bf16.xpose.msra.mxu0 0
        %1338 = vmatpush.bf16.xpose.msra.mxu0 0
        %1339 = vmatpush.bf16.xpose.msra.mxu0 %v1330
        %1340 = vmatmul.bf16.gmra.mxu0 %v1327
        %v1341 = vpop.f32.mrf.mxu0
        %v1342 = vadd.f32 %v648, %v1341
        %v1343 = vpop.f32.mrf.mxu0
        %1344 = vdwg.mxu0
        %v1345 = vsel %vm750, %v1342, -inf
        %1346 = vmax.xlane.f32.xlu0 %v1345
        %v1347 = vpop.xlane.xlu0 %1346
        %v1348 = vsub.f32 %v1342, %v1347
        %v1349 = vmul.f32 %v1348, 1.442695
        %v1350 = vpow.pop %v1349
        %v1351 = vsel %vm750, %v1350, 0.0
        %1352 = vadd.xlane.f32.xlu0 %v1351
        %v1353 = vpop.xlane.xlu0 %1352
        %v1354 = vpack.c.bf16 %v1350, %v1350
        %1355 = vrot.lane.b32.xlu0 %v1298, 56
        %v1356 = vpop.permute.xlu0 %1355
        %v1358 = vsel %vm750, %v1354, 0
        %v1361 = vsel %vm788, %v1356, 0
        %1363 = vmatpush.bf16.msra.mxu0 0
        %1364 = vmatpush.bf16.msra.mxu0 0
        %1365 = vmatpush.bf16.msra.mxu0 0
        %1366 = vmatpush.bf16.msra.mxu0 0
        %1367 = vmatpush.bf16.msra.mxu0 0
        %1368 = vmatpush.bf16.msra.mxu0 0
        %1369 = vmatpush.bf16.msra.mxu0 0
        %1370 = vmatpush.bf16.msra.mxu0 %v1361
        %1371 = vmatmul.bf16.gmra.mxu0 %v1358
        %v1372 = vpop.f32.mrf.mxu0
        %v1373 = vadd.f32 0.0, %v1372
        %v1374 = vpop.f32.mrf.mxu0
        %1375 = vdwg.mxu0
        %v1376 = vrcp.pop %v1353
        %v1377 = vmul.f32 %v1373, %v1376
        %1378 = vrot.lane.b32.xlu0 %v1264, 80
        %v1379 = vpop.permute.xlu0 %1378
        %1380 = vrot.lane.b32.xlu0 %v1298, 112
        %v1381 = vpop.permute.xlu0 %1380
        %v1383 = vsel %vm750, %v1379, 0
        %v1386 = vsel %vm750, %v1381, 0
        %1388 = vmatpush.bf16.xpose.msra.mxu0 0
        %1389 = vmatpush.bf16.xpose.msra.mxu0 0
        %1390 = vmatpush.bf16.xpose.msra.mxu0 0
        %1391 = vmatpush.bf16.xpose.msra.mxu0 0
        %1392 = vmatpush.bf16.xpose.msra.mxu0 0
        %1393 = vmatpush.bf16.xpose.msra.mxu0 0
        %1394 = vmatpush.bf16.xpose.msra.mxu0 0
        %1395 = vmatpush.bf16.xpose.msra.mxu0 %v1386
        %1396 = vmatmul.bf16.gmra.mxu0 %v1383
        %v1397 = vpop.f32.mrf.mxu0
        %v1398 = vadd.f32 %v648, %v1397
        %v1399 = vpop.f32.mrf.mxu0
        %1400 = vdwg.mxu0
        %v1401 = vsel %vm750, %v1398, -inf
        %1402 = vmax.xlane.f32.xlu0 %v1401
        %v1403 = vpop.xlane.xlu0 %1402
        %v1404 = vsub.f32 %v1398, %v1403
        %v1405 = vmul.f32 %v1404, 1.442695
        %v1406 = vpow.pop %v1405
        %v1407 = vsel %vm750, %v1406, 0.0
        %1408 = vadd.xlane.f32.xlu0 %v1407
        %v1409 = vpop.xlane.xlu0 %1408
        %v1410 = vpack.c.bf16 %v1406, %v1406
        %1411 = vrot.lane.b32.xlu0 %v1298, 48
        %v1412 = vpop.permute.xlu0 %1411
        %v1414 = vsel %vm750, %v1410, 0
        %v1417 = vsel %vm788, %v1412, 0
        %1419 = vmatpush.bf16.msra.mxu0 0
        %1420 = vmatpush.bf16.msra.mxu0 0
        %1421 = vmatpush.bf16.msra.mxu0 0
        %1422 = vmatpush.bf16.msra.mxu0 0
        %1423 = vmatpush.bf16.msra.mxu0 0
        %1424 = vmatpush.bf16.msra.mxu0 0
        %1425 = vmatpush.bf16.msra.mxu0 0
        %1426 = vmatpush.bf16.msra.mxu0 %v1417
        %1427 = vmatmul.bf16.gmra.mxu0 %v1414
        %v1428 = vpop.f32.mrf.mxu0
        %v1429 = vadd.f32 0.0, %v1428
        %v1430 = vpop.f32.mrf.mxu0
        %1431 = vdwg.mxu0
        %v1432 = vrcp.pop %v1409
        %v1433 = vmul.f32 %v1429, %v1432
        %1434 = vrot.lane.b32.xlu0 %v1264, 72
        %v1435 = vpop.permute.xlu0 %1434
        %1436 = vrot.lane.b32.xlu0 %v1298, 104
        %v1437 = vpop.permute.xlu0 %1436
        %v1439 = vsel %vm750, %v1435, 0
        %v1442 = vsel %vm750, %v1437, 0
        %1444 = vmatpush.bf16.xpose.msra.mxu0 0
        %1445 = vmatpush.bf16.xpose.msra.mxu0 0
        %1446 = vmatpush.bf16.xpose.msra.mxu0 0
        %1447 = vmatpush.bf16.xpose.msra.mxu0 0
        %1448 = vmatpush.bf16.xpose.msra.mxu0 0
        %1449 = vmatpush.bf16.xpose.msra.mxu0 0
        %1450 = vmatpush.bf16.xpose.msra.mxu0 0
        %1451 = vmatpush.bf16.xpose.msra.mxu0 %v1442
        %1452 = vmatmul.bf16.gmra.mxu0 %v1439
        %v1453 = vpop.f32.mrf.mxu0
        %v1454 = vadd.f32 %v648, %v1453
        %v1455 = vpop.f32.mrf.mxu0
        %1456 = vdwg.mxu0
        %v1457 = vsel %vm750, %v1454, -inf
        %1458 = vmax.xlane.f32.xlu0 %v1457
        %v1459 = vpop.xlane.xlu0 %1458
        %v1460 = vsub.f32 %v1454, %v1459
        %v1461 = vmul.f32 %v1460, 1.442695
        %v1462 = vpow.pop %v1461
        %v1463 = vsel %vm750, %v1462, 0.0
        %1464 = vadd.xlane.f32.xlu0 %v1463
        %v1465 = vpop.xlane.xlu0 %1464
        %v1466 = vpack.c.bf16 %v1462, %v1462
        %1467 = vrot.lane.b32.xlu0 %v1298, 40
        %v1468 = vpop.permute.xlu0 %1467
        %v1470 = vsel %vm750, %v1466, 0
        %v1473 = vsel %vm788, %v1468, 0
        %1475 = vmatpush.bf16.msra.mxu0 0
        %1476 = vmatpush.bf16.msra.mxu0 0
        %1477 = vmatpush.bf16.msra.mxu0 0
        %1478 = vmatpush.bf16.msra.mxu0 0
        %1479 = vmatpush.bf16.msra.mxu0 0
        %1480 = vmatpush.bf16.msra.mxu0 0
        %1481 = vmatpush.bf16.msra.mxu0 0
        %1482 = vmatpush.bf16.msra.mxu0 %v1473
        %1483 = vmatmul.bf16.gmra.mxu0 %v1470
        %v1484 = vpop.f32.mrf.mxu0
        %v1485 = vadd.f32 0.0, %v1484
        %v1486 = vpop.f32.mrf.mxu0
        %1487 = vdwg.mxu0
        %v1488 = vrcp.pop %v1465
        %v1489 = vmul.f32 %v1485, %v1488
        %1491 = vrot.lane.b32.xlu0 %v1377, 8
        %v1492 = vpop.permute.xlu0 %1491
        %1495 = vrot.lane.b32.xlu0 %v1433, 16
        %v1496 = vpop.permute.xlu0 %1495
        %1499 = vrot.lane.b32.xlu0 %v1489, 24
        %v1500 = vpop.permute.xlu0 %1499
        %v1502 = vsel %vm750, %v1321, %v1492
        %v1503 = vsel %vm988, %v1502, %v1496
        %v1504 = vsel %vm990, %v1503, %v1500
        %v1505 = vadd.f32 %v1204, %v1504
        %v1506 = vsel %vm661, %v1505, 0.0
        %1507 = vadd.xlane.f32.xlu0 %v1506
        %v1508 = vpop.xlane.xlu0 %1507
        %v1509 = vmul.f32 %v1508, %v671
        %v1510 = vsub.f32 %v1505, %v1509
        %v1511 = vmul.f32 %v1510, %v1510
        %v1512 = vsel %vm661, %v1511, 0.0
        %1513 = vadd.xlane.f32.xlu0 %v1512
        %v1514 = vpop.xlane.xlu0 %1513
        %v1515 = vmul.f32 %v1514, %v671
        %v1516 = vadd.f32 %v1515, 1e-05
        %v1517 = vrsqrt.pop %v1516
        %v1518 = vmul.f32 %v1517, %v1516
        %v1519 = vmul.f32 %v1518, %v1517
        %v1520 = vmul.f32 0.5, %v1519
        %v1521 = vsub.f32 1.5, %v1520
        %v1522 = vmul.f32 %v1517, %v1521
        %vm1523 = vweird.f32 %v1516
        %vm1524 = vweird.f32 %v1517
        %vm1525 = vmor %vm1523, %vm1524
        %v1526 = vsel %vm1525, %v1517, %v1522
        %v1527 = vmul.f32 %v1510, %v1526
        %v1528 = vmul.f32 %v1527, %v1016
        %v1529 = vadd.f32 %v1528, %v1020
        %1530 = vrot.lane.b32.xlu0 %v1233, 32
        %v1531 = vpop.permute.xlu0 %1530
        %v1533 = vmul.f32 %v1529, %v1531
        %1534 = vrot.lane.b32.xlu0 %v1239, 64
        %v1535 = vpop.permute.xlu0 %1534
        %v1537 = vadd.f32 %v1533, %v1535
        %v1538 = vpack.c.bf16 %v1537, %v1537
        %v1539 = vld [vmem:[%s625] sm:$0xf]
        %v1540 = vld [vmem:[%s625 + $0x4] sm:$0xf]
        %v1541 = vld [vmem:[%s625 + $0x8] sm:$0xf]
        %v1542 = vld [vmem:[%s625 + $0xc] sm:$0xf]
        %v1543 = vld [vmem:[%s628] sm:$0x1]
        %v1544 = vld [vmem:[%s633] sm:$0xf]
        %v1545 = vld [vmem:[%s633 + $0x4] sm:$0xf]
        %v1546 = vld [vmem:[%s633 + $0x8] sm:$0xf]
        %v1547 = vld [vmem:[%s633 + $0xc] sm:$0xf]
        %v1548 = vld [vmem:[%s633 + $0x10] sm:$0xf]
        %v1549 = vld [vmem:[%s633 + $0x14] sm:$0xf]
        %v1550 = vld [vmem:[%s633 + $0x18] sm:$0xf]
        %v1551 = vld [vmem:[%s633 + $0x1c] sm:$0xf]
        %v1552 = vld [vmem:[%s633 + $0x20] sm:$0xf]
        %v1553 = vld [vmem:[%s633 + $0x24] sm:$0xf]
        %v1554 = vld [vmem:[%s633 + $0x28] sm:$0xf]
        %v1555 = vld [vmem:[%s633 + $0x2c] sm:$0xf]
        %v1556 = vld [vmem:[%s633 + $0x30] sm:$0xf]
        %v1557 = vld [vmem:[%s633 + $0x34] sm:$0xf]
        %v1558 = vld [vmem:[%s633 + $0x38] sm:$0xf]
        %v1559 = vld [vmem:[%s633 + $0x3c] sm:$0xf]
        %v1561 = vperm.slane %v1543, 0
        %v1567 = vunpack.c.l.b16 %v1539
        %v1568 = vunpack.c.l.b16 %v1540
        %v1569 = vunpack.c.l.b16 %v1541
        %v1570 = vunpack.c.l.b16 %v1542
        %v1571 = vpack.c.b16 %v1568, %v1567
        %v1572 = vpack.c.b16 %v1570, %v1569
        %v1576 = vsel %vm661, %v1538, 0
        %1578 = vmatpush.bf16.msra.mxu0 0
        %1579 = vmatpush.bf16.msra.mxu0 0
        %1580 = vmatpush.bf16.msra.mxu0 0
        %1581 = vmatpush.bf16.msra.mxu0 0
        %1582 = vmatpush.bf16.msra.mxu0 0
        %1583 = vmatpush.bf16.msra.mxu0 0
        %1584 = vmatpush.bf16.msra.mxu0 %v1572
        %1585 = vmatpush.bf16.msra.mxu0 %v1571
        %1586 = vmatmul.bf16.gmra.mxu0 %v1576
        %v1587 = vpop.f32.mrf.mxu0
        %v1588 = vadd.f32 %v1561, %v1587
        %v1589 = vpop.f32.mrf.mxu0
        %1590 = vdwg.mxu0
        %v1591 = vmul.f32 %v1588, 0.5
        %v1592 = vmul.f32 %v1588, 0.70710677
        %vm1593 = vcmp.ge.f32.partialorder %v1592, 0.0
        %v1594 = vsel %vm1593, 1.0, -1.0
        %v1595 = vand.u32 2147483647, %v1592
        %v1596 = vmul.f32 %v1595, 0.3275911
        %v1597 = vadd.f32 %v1596, 1.0
        %v1598 = vrcp.pop %v1597
        %v1599 = vmul.f32 %v1598, 1.0614054
        %v1600 = vadd.f32 %v1599, -1.4531521
        %v1601 = vmul.f32 %v1600, %v1598
        %v1602 = vadd.f32 %v1601, 1.4214138
        %v1603 = vmul.f32 %v1602, %v1598
        %v1604 = vadd.f32 %v1603, -0.28449672
        %v1605 = vmul.f32 %v1604, %v1598
        %v1606 = vadd.f32 %v1605, 0.2548296
        %v1607 = vmul.f32 %v1606, %v1598
        %v1608 = vsub.f32 0.0, %v1595
        %v1609 = vmul.f32 %v1608, %v1595
        %v1610 = vmul.f32 %v1609, 1.442695
        %v1611 = vpow.pop %v1610
        %v1612 = vmul.f32 %v1607, %v1611
        %v1613 = vsub.f32 1.0, %v1612
        %v1614 = vmul.f32 %v1594, %v1613
        %v1615 = vadd.f32 %v1614, 1.0
        %v1616 = vmul.f32 %v1591, %v1615
        %v1617 = vpack.c.bf16 %v1616, %v1616
        %v1634 = vunpack.c.l.b16 %v1544
        %v1635 = vunpack.c.l.b16 %v1545
        %v1636 = vunpack.c.l.b16 %v1546
        %v1637 = vunpack.c.l.b16 %v1547
        %v1638 = vunpack.c.l.b16 %v1548
        %v1639 = vunpack.c.l.b16 %v1549
        %v1640 = vunpack.c.l.b16 %v1550
        %v1641 = vunpack.c.l.b16 %v1551
        %v1642 = vunpack.c.l.b16 %v1552
        %v1643 = vunpack.c.l.b16 %v1553
        %v1644 = vunpack.c.l.b16 %v1554
        %v1645 = vunpack.c.l.b16 %v1555
        %v1646 = vunpack.c.l.b16 %v1556
        %v1647 = vunpack.c.l.b16 %v1557
        %v1648 = vunpack.c.l.b16 %v1558
        %v1649 = vunpack.c.l.b16 %v1559
        %v1650 = vpack.c.b16 %v1635, %v1634
        %v1651 = vpack.c.b16 %v1637, %v1636
        %v1652 = vpack.c.b16 %v1639, %v1638
        %v1653 = vpack.c.b16 %v1641, %v1640
        %v1654 = vpack.c.b16 %v1643, %v1642
        %v1655 = vpack.c.b16 %v1645, %v1644
        %v1656 = vpack.c.b16 %v1647, %v1646
        %v1657 = vpack.c.b16 %v1649, %v1648
        %1666 = vmatpush.bf16.msra.mxu0 %v1657
        %1667 = vmatpush.bf16.msra.mxu0 %v1656
        %1668 = vmatpush.bf16.msra.mxu0 %v1655
        %1669 = vmatpush.bf16.msra.mxu0 %v1654
        %1670 = vmatpush.bf16.msra.mxu0 %v1653
        %1671 = vmatpush.bf16.msra.mxu0 %v1652
        %1672 = vmatpush.bf16.msra.mxu0 %v1651
        %1673 = vmatpush.bf16.msra.mxu0 %v1650
        %1674 = vmatmul.bf16.gmra.mxu0 %v1617
        %v1675 = vpop.f32.mrf.mxu0
        %v1676 = vadd.f32 %v1112, %v1675
        %v1677 = vpop.f32.mrf.mxu0
        %1678 = vdwg.mxu0
        %v1679 = vmul.f32 %v1676, 0.5
        %v1680 = vmul.f32 %v1676, 0.70710677
        %vm1681 = vcmp.ge.f32.partialorder %v1680, 0.0
        %v1682 = vsel %vm1681, 1.0, -1.0
        %v1683 = vand.u32 2147483647, %v1680
        %v1684 = vmul.f32 %v1683, 0.3275911
        %v1685 = vadd.f32 %v1684, 1.0
        %v1686 = vrcp.pop %v1685
        %v1687 = vmul.f32 %v1686, 1.0614054
        %v1688 = vadd.f32 %v1687, -1.4531521
        %v1689 = vmul.f32 %v1688, %v1686
        %v1690 = vadd.f32 %v1689, 1.4214138
        %v1691 = vmul.f32 %v1690, %v1686
        %v1692 = vadd.f32 %v1691, -0.28449672
        %v1693 = vmul.f32 %v1692, %v1686
        %v1694 = vadd.f32 %v1693, 0.2548296
        %v1695 = vmul.f32 %v1694, %v1686
        %v1696 = vsub.f32 0.0, %v1683
        %v1697 = vmul.f32 %v1696, %v1683
        %v1698 = vmul.f32 %v1697, 1.442695
        %v1699 = vpow.pop %v1698
        %v1700 = vmul.f32 %v1695, %v1699
        %v1701 = vsub.f32 1.0, %v1700
        %v1702 = vmul.f32 %v1682, %v1701
        %v1703 = vadd.f32 %v1702, 1.0
        %v1704 = vmul.f32 %v1679, %v1703
        %v1705 = vadd.f32 %v1505, %v1704
        %1706 = vst.msk [vmem:[%s1203] sm:$0xff] %vm661, %v1705
        %p1707 = scmp.eq.s32.totalorder %s30, 1
        // Predicated region
        $region77: #{tpu_custom_call.1} parent=71 // pred_check
          %p1708 = pneg %p1707
        $region78: #{tpu_custom_call.1} parent=71 // pred_check_branch
          %1710 = sbr.rel (%p1708) target = $region80
        $region79: #{tpu_custom_call.1} parent=71 // pred_region
          %v1711 = vld [vmem:[#allocation2] sm:$0xff]
          %v1712 = vld [vmem:[#allocation2 + $0x8] sm:$0xff]
          %1713 = vst.msk [vmem:[#allocation3] sm:$0xff] %vm661, %v1711
          %1714 = vst.msk [vmem:[#allocation3 + $0x8] sm:$0xff] %vm661, %v1712
        $region80: #{tpu_custom_call.1} parent=71 // pred_fallthru
          _
        // Predicated region
        $region81: #{tpu_custom_call.1} parent=71 // pred_check
          %p1715 = pneg %p390
        $region82: #{tpu_custom_call.1} parent=71 // pred_check_branch
          %1717 = sbr.rel (%p1715) target = $region84
        $region83: #{tpu_custom_call.1} parent=71 // pred_region
          %s1718 = smul.u32 2, %s29
          %1720 = vsyncadd [#allocation4], 0
          %s1721 = smul.addr %s1718, 8
          %s1722 = scalar_lea.hbm %s13, %s1721
          %s1723 = sshll.u32 [#allocation3], 4
          %s1724 = int_to_ptr.vmem [resolvable:$true] %s1723
          %s1725 = sshll.u32 %s1722, 4
          %s1726 = int_to_ptr.hbm [resolvable:$true] %s1725
          %1731 = dma.vmem_to_hbm [thread:$0]  %s1724, 256, %s1726, [#allocation4], 128, 128, 8
        $region84: #{tpu_custom_call.1} parent=71 // pred_fallthru
          _
        // Predicated region
        $region85: #{tpu_custom_call.1} parent=71 // pred_check
          %p1732 = pneg %p390
        $region86: #{tpu_custom_call.1} parent=71 // pred_check_branch
          %1734 = sbr.rel (%p1732) target = $region88
        $region87: #{tpu_custom_call.1} parent=71 // pred_region
          %1736 = dma.done [#allocation4], 256
        $region88: #{tpu_custom_call.1} parent=71 // pred_fallthru
          _
      $region72: #{tpu_custom_call.1} parent=5 // pred_fallthru
        _
      %p1737 = scmp.le.s32.totalorder 2, %s20
      // Predicated region
      $region89: #{tpu_custom_call.1} parent=5 // pred_check
        %p1738 = pneg %p1737
      $region90: #{tpu_custom_call.1} parent=5 // pred_check_branch
        %1740 = sbr.rel (%p1738) target = $region92
      $region91: #{tpu_custom_call.1} parent=5 // pred_region
        %s1741 = ssub.s32 %s20, 2
      $region92: #{tpu_custom_call.1} parent=5 // pred_fallthru
        _
    $region6: #{tpu_custom_call.1} parent=1 // loop_footer
      %s24 = sadd.s32 1, %s20
    $region7: #{tpu_custom_call.1} parent=1 // loop_footer_branch
      %19 = sbr.rel target = $region3
    $region8: #{tpu_custom_call.1} parent=1 // loop_exit
      _
    %1742 = vsyncpa [#allocation4], 1
    %s1743 = scalar_lea.sflag [#allocation4], 1
    %1744 = vsyncpa %s1743, 1

</llo_original>
